<compile_context>
chip_gen: v5e
topology: v5e:2x2
jax: 0.10.0
libtpu: 0.0.40
codegen_flags: <defaults>
</compile_context>

<pallas_src>
import functools
import math

import jax
import jax.numpy as jnp
from jax import lax
from jax.experimental import pallas as pl
from jax.experimental.pallas import tpu as pltpu

EPS = 1e-5                     # config.layer_norm_epsilon
NEG_INF = -1e30                # finite "masked" score: exp underflows to 0, no inf math


def _vmem_limit_bytes():
    # ~75% of physical VMEM, capped at 100 MiB:
    #   v5e/v6e (128 MiB physical) -> 96 MiB, v7x (64 MiB physical) -> 48 MiB.
    try:
        cap = int(pltpu.get_tpu_info().vmem_capacity_bytes)
    except Exception:
        cap = 64 * 1024 * 1024
    return min(cap * 3 // 4, 100 * 1024 * 1024)


VMEM_LIMIT_BYTES = _vmem_limit_bytes()


def _layer_norm(x, w, b):
    # PyTorch LayerNorm: biased variance, eps inside the sqrt. f32 math.
    x = x.astype(jnp.float32)
    mu = jnp.mean(x, axis=-1, keepdims=True)
    var = jnp.mean((x - mu) ** 2, axis=-1, keepdims=True)
    return (x - mu) / jnp.sqrt(var + EPS) * w + b


def _gelu_exact(x):
    # nn.GELU() default: exact erf-based formulation.
    return 0.5 * x * (1.0 + lax.erf(x * (1.0 / math.sqrt(2.0))))


# ---------------------------------------------------------------------------
# Fused GPT-2 decoder block kernel
# ---------------------------------------------------------------------------
def gpt2_block_kernel(x_ref, ln1w_ref, ln1b_ref,
                      wqkv_ref, bqkv_ref, wo_ref, bo_ref,
                      ln2w_ref, ln2b_ref,
                      w1_ref, b1_ref, w2_ref, b2_ref,
                      out_ref, k_cache, v_cache,
                      *, num_heads, head_size, seq_tile):
    qi = pl.program_id(1)                      # which q-tile of the sequence
    tq = seq_tile
    H = num_heads * head_size
    inv_sqrt_dk = 1.0 / math.sqrt(head_size)
    f32 = jnp.float32
    bf16 = jnp.bfloat16

    # ---- LayerNorm of this q-tile (computed exactly once) ----
    x_q = x_ref[0].astype(f32)                                     # (tq, H)
    hn = _layer_norm(x_q, ln1w_ref[...], ln1b_ref[...])
    hn_b = hn.astype(bf16)

    # ---- fused QKV projection: one lane-dense (tq, H) @ (H, 3H) matmul ----
    qkv = jnp.dot(hn_b, wqkv_ref[...],
                  preferred_element_type=f32) + bqkv_ref[...]      # (tq, 3H)
    q_all = qkv[:, :H] * inv_sqrt_dk                               # pre-scaled Q
    k_all = qkv[:, H:2 * H].astype(bf16)
    v_all = qkv[:, 2 * H:].astype(bf16)

    # ---- append this tile's K/V to the lane-dense (S, H) bf16 caches ----
    # (the cache persists across grid steps; q-tiles of one batch element run
    #  sequentially, so tiles 0..qi-1 were filled by earlier steps)
    r0 = pl.multiple_of(qi * tq, tq)
    k_cache[pl.ds(r0, tq), :] = k_all
    v_cache[pl.ds(r0, tq), :] = v_all

    # static strictly-upper-triangular mask, used only on the diagonal KV tile
    row_loc = lax.broadcasted_iota(jnp.int32, (tq, 1), 0)
    col_loc = lax.broadcasted_iota(jnp.int32, (1, tq), 1)
    diag_mask = col_loc > row_loc

    def online_update(carry, s, v_t):
        m_i, l_i, acc = carry
        m_new = jnp.maximum(m_i, jnp.max(s, axis=-1, keepdims=True))
        alpha = jnp.exp(m_i - m_new)
        p = jnp.exp(s - m_new)
        l_new = alpha * l_i + jnp.sum(p, axis=-1, keepdims=True)
        acc_new = alpha * acc + jnp.dot(p.astype(bf16), v_t,
                                        preferred_element_type=f32)
        return m_new, l_new, acc_new

    # Static (unrolled) loop over heads: cache slices keep their dynamic offset
    # on the sublane axis and a static lane range (robust lowering).
    # TODO(synk): on v7x with small batch, add a head-group grid axis so both
    # TensorCores are used (each group would need its own K/V cache region).
    ctx_parts = []
    for h in range(num_heads):
        c0, c1 = h * head_size, (h + 1) * head_size
        q_h = q_all[:, c0:c1].astype(bf16)                         # (tq, hd)

        def kv_step(j, carry):
            kv_off = pl.multiple_of(j * tq, tq)
            k_t = k_cache[pl.ds(kv_off, tq), c0:c1]                # (tq, hd) bf16
            v_t = v_cache[pl.ds(kv_off, tq), c0:c1]                # (tq, hd) bf16
            s = lax.dot_general(q_h, k_t, (((1,), (1,)), ((), ())),
                                preferred_element_type=f32)        # (tq, tq) f32
            return online_update(carry, s, v_t)                    # no mask: past

        m0 = jnp.full((tq, 1), NEG_INF, f32)
        l0 = jnp.zeros((tq, 1), f32)
        a0 = jnp.zeros((tq, head_size), f32)
        carry = lax.fori_loop(0, qi, kv_step, (m0, l0, a0))        # strictly past

        # diagonal KV tile: this q-tile's own K/V (still in registers), masked
        s_d = lax.dot_general(q_h, k_all[:, c0:c1], (((1,), (1,)), ((), ())),
                              preferred_element_type=f32)
        s_d = jnp.where(diag_mask, NEG_INF, s_d)
        m_i, l_i, acc = online_update(carry, s_d, v_all[:, c0:c1])

        ctx_parts.append((acc * pl.reciprocal(l_i, approx=True)).astype(bf16))

    # ---- single full-depth output projection: (tq, H) @ (H, H) ----
    ctx = jnp.concatenate(ctx_parts, axis=1)                       # (tq, H) bf16
    z = jnp.dot(ctx, wo_ref[...], preferred_element_type=f32) + bo_ref[...]
    x1 = x_q + z                                                   # residual 1

    # ---- MLP: LayerNorm -> Linear -> exact GELU -> Linear ----
    # TODO(synk): for GPT-2 medium/large on v7x, chunk w1/w2 along the 4H axis.
    h2 = _layer_norm(x1, ln2w_ref[...], ln2b_ref[...]).astype(bf16)
    m1 = jnp.dot(h2, w1_ref[...], preferred_element_type=f32) + b1_ref[...]
    g = _gelu_exact(m1).astype(bf16)
    m2 = jnp.dot(g, w2_ref[...], preferred_element_type=f32) + b2_ref[...]

    out_ref[0] = (x1 + m2).astype(out_ref.dtype)                   # residual 2


def _full_spec(shape):
    idx = (0,) * len(shape)
    return pl.BlockSpec(shape, lambda b, q, _idx=idx: _idx)


def _build_block_call(B, S, H, num_heads, head_size, seq_tile, dtype,
                      param_shapes):
    kernel = functools.partial(gpt2_block_kernel, num_heads=num_heads,
                               head_size=head_size, seq_tile=seq_tile)
    in_specs = [pl.BlockSpec((1, seq_tile, H), lambda b, q: (b, q, 0))]   # x tile
    in_specs += [_full_spec(s) for s in param_shapes]
    out_spec = pl.BlockSpec((1, seq_tile, H), lambda b, q: (b, q, 0))     # lane-dense

    return pl.pallas_call(
        kernel,
        out_shape=jax.ShapeDtypeStruct((B, S, H), dtype),
        grid_spec=pltpu.PrefetchScalarGridSpec(
            num_scalar_prefetch=0,
            grid=(B, S // seq_tile),
            in_specs=in_specs,
            out_specs=out_spec,
            scratch_shapes=[
                pltpu.VMEM((S, H), jnp.bfloat16),      # K cache (lane-dense)
                pltpu.VMEM((S, H), jnp.bfloat16),      # V cache (lane-dense)
            ]),
        compiler_params=pltpu.CompilerParams(
            dimension_semantics=("parallel", "arbitrary"),
            vmem_limit_bytes=VMEM_LIMIT_BYTES))


_BLOCK_CALL_CACHE = {}


def _pick_tile(n, cap):
    t = min(n, cap)
    while t > 1 and n % t != 0:
        t //= 2
    return t if (t >= 1 and n % t == 0) else n


def gpt2_block(x, kparams, num_heads, *, seq_tile=None):
    B, S, H = x.shape
    head_size = H // num_heads
    if seq_tile is None or S % seq_tile != 0:
        # TODO(synk): mask/pad a ragged tail tile instead of shrinking the tile.
        seq_tile = _pick_tile(S, 128)

    param_shapes = tuple(tuple(p.shape) for p in kparams)
    cache_key = (B, S, H, num_heads, seq_tile, x.dtype, param_shapes)
    fn = _BLOCK_CALL_CACHE.get(cache_key)
    if fn is None:
        fn = jax.jit(_build_block_call(B, S, H, num_heads, head_size, seq_tile,
                                       x.dtype, param_shapes))
        _BLOCK_CALL_CACHE[cache_key] = fn
    return fn(x, *kparams)


def prepare_block_params(raw, matmul_dtype=jnp.bfloat16):
    """Torch-layout block params -> kernel dtypes.

    raw = (ln1w, ln1b, wqkv, bqkv, wo, bo, ln2w, ln2b, w1, b1, w2, b2) with
    Linear weights stored as (in_features, out_features) and 1-D params as (1, dim).
    """
    (ln1w, ln1b, wqkv, bqkv, wo, bo, ln2w, ln2b, w1, b1, w2, b2) = raw
    f32 = jnp.float32
    return (ln1w.astype(f32), ln1b.astype(f32),
            wqkv.astype(matmul_dtype), bqkv.astype(f32),
            wo.astype(matmul_dtype), bo.astype(f32),
            ln2w.astype(f32), ln2b.astype(f32),
            w1.astype(matmul_dtype), b1.astype(f32),
            w2.astype(matmul_dtype), b2.astype(f32))


# ---------------------------------------------------------------------------
# Final LayerNorm + tied unembedding kernel (tiled over batch, seq, vocab)
# ---------------------------------------------------------------------------
def final_ln_logits_kernel(x_ref, w_ref, b_ref, wte_ref, out_ref):
    h = _layer_norm(x_ref[0], w_ref[...], b_ref[...])
    logits = lax.dot_general(h.astype(jnp.bfloat16), wte_ref[...],
                             (((1,), (1,)), ((), ())),
                             preferred_element_type=jnp.float32)
    out_ref[0] = logits.astype(out_ref.dtype)


def final_ln_logits(x, lnw, lnb, wte, *, seq_tile=None, vocab_tile=None):
    B, S, H = x.shape
    V = wte.shape[0]
    if seq_tile is None or S % seq_tile != 0:
        seq_tile = _pick_tile(S, 256)
    if vocab_tile is None or V % vocab_tile != 0:
        # TODO(synk): the real GPT-2 vocab (50257) needs padding to a multiple
        # of the vocab tile; here exact divisibility is required.
        vocab_tile = _pick_tile(V, 2048)

    return pl.pallas_call(
        final_ln_logits_kernel,
        out_shape=jax.ShapeDtypeStruct((B, S, V), jnp.float32),
        grid_spec=pltpu.PrefetchScalarGridSpec(
            num_scalar_prefetch=0,
            grid=(B, S // seq_tile, V // vocab_tile),
            in_specs=[pl.BlockSpec((1, seq_tile, H), lambda b, s, v: (b, s, 0)),
                      pl.BlockSpec((1, H), lambda b, s, v: (0, 0)),
                      pl.BlockSpec((1, H), lambda b, s, v: (0, 0)),
                      pl.BlockSpec((vocab_tile, H), lambda b, s, v: (v, 0))],
            out_specs=pl.BlockSpec((1, seq_tile, vocab_tile),
                                   lambda b, s, v: (b, s, v))),
        compiler_params=pltpu.CompilerParams(
            dimension_semantics=("parallel", "parallel", "arbitrary"),
            vmem_limit_bytes=VMEM_LIMIT_BYTES),
    )(x, lnw, lnb, wte.astype(jnp.bfloat16))


# ---------------------------------------------------------------------------
# Full GPT2Model forward built on the Pallas block kernel
# ---------------------------------------------------------------------------
def gpt2_model(tokens, model_params, num_heads, *, seq_tile=None):
    wte, wpe, block_kparams, lnf_w, lnf_b = model_params
    if tokens.ndim == 1:
        tokens = tokens[None]
    S = tokens.shape[1]
    # TODO(synk): token/position embedding gather is left to XLA (pure memory-bound gather).
    x = wte[tokens] + wpe[None, :S, :]
    for kparams in block_kparams:
        x = gpt2_block(x, kparams, num_heads, seq_tile=seq_tile)
    return final_ln_logits(x, lnf_w, lnf_b, wte)


# ---------------------------------------------------------------------------
# Pure-JAX references (mirror the PyTorch forward, f32)
# ---------------------------------------------------------------------------
def gpt2_block_ref(x, raw, num_heads):
    (ln1w, ln1b, wqkv, bqkv, wo, bo, ln2w, ln2b, w1, b1, w2, b2) = raw
    B, S, H = x.shape
    hd = H // num_heads

    h = _layer_norm(x, ln1w, ln1b)
    qkv = h @ wqkv + bqkv
    q, k, v = qkv[..., :H], qkv[..., H:2 * H], qkv[..., 2 * H:]
    q = q.reshape(B, S, num_heads, hd)
    k = k.reshape(B, S, num_heads, hd)
    v = v.reshape(B, S, num_heads, hd)
    mask = jnp.triu(jnp.ones((S, S), dtype=bool), k=1)
    qk = jnp.einsum('abcd,aecd->acbe', q, k)
    mqk = jnp.where(mask, -jnp.inf, qk)
    p = jax.nn.softmax(mqk / math.sqrt(hd), axis=3)
    res = jnp.einsum('abcd,adbe->acbe', p, v)
    z = res.reshape(B, S, H) @ wo + bo
    x1 = x + z

    h2 = _layer_norm(x1, ln2w, ln2b)
    m = jax.nn.gelu(h2 @ w1 + b1, approximate=False) @ w2 + b2
    return x1 + m


def gpt2_model_ref(tokens, model_params, num_heads):
    wte, wpe, blocks_raw, lnf_w, lnf_b = model_params
    if tokens.ndim == 1:
        tokens = tokens[None]
    S = tokens.shape[1]
    x = wte[tokens] + wpe[None, :S, :]
    for raw in blocks_raw:
        x = gpt2_block_ref(x, raw, num_heads)
    x = _layer_norm(x, lnf_w, lnf_b)
    return x @ wte.T


if __name__ == "__main__":
    B, S, H, NH = 2, 16, 32, 4       # batch, seq, hidden, heads (head_size = 8)
    V, L, TQ = 128, 2, 8             # vocab, layers, sequence tile (-> 2 q-tiles)

    key = jax.random.PRNGKey(0)
    f32 = jnp.float32

    def normal(k, shape, scale=0.1):
        return scale * jax.random.normal(k, shape, f32)

    def init_block_raw(k):
        ks = jax.random.split(k, 12)
        return (1.0 + normal(ks[0], (1, H), 0.05), normal(ks[1], (1, H)),
                normal(ks[2], (H, 3 * H)), normal(ks[3], (1, 3 * H)),
                normal(ks[4], (H, H)), normal(ks[5], (1, H)),
                1.0 + normal(ks[6], (1, H), 0.05), normal(ks[7], (1, H)),
                normal(ks[8], (H, 4 * H)), normal(ks[9], (1, 4 * H)),
                normal(ks[10], (4 * H, H)), normal(ks[11], (1, H)))

    k_blocks, k_wte, k_wpe, k_lnf, k_x, k_tok = jax.random.split(key, 6)

    raw_blocks = [init_block_raw(k) for k in jax.random.split(k_blocks, L)]
    block_kparams = [prepare_block_params(r) for r in raw_blocks]

    # ---- 1) single fused decoder block vs. pure-JAX reference ----
    x = jax.random.normal(k_x, (B, S, H), f32)
    out = gpt2_block(x, block_kparams[0], NH, seq_tile=TQ)
    out = jax.block_until_ready(out)
    ref = gpt2_block_ref(x, raw_blocks[0], NH)
    assert out.shape == (B, S, H)
    assert jnp.allclose(out, ref, atol=2e-2, rtol=2e-2), (
        "block kernel mismatch: max |err| = %f"
        % float(jnp.max(jnp.abs(out - ref))))

    # ---- 2) full GPT2Model forward (embeddings -> L blocks -> LN -> logits) ----
    wte = normal(k_wte, (V, H))
    wpe = normal(k_wpe, (S, H))
    kl = jax.random.split(k_lnf, 2)
    lnf_w = 1.0 + normal(kl[0], (1, H), 0.05)
    lnf_b = normal(kl[1], (1, H))
    tokens = jax.random.randint(k_tok, (B, S), 0, V)

    logits = gpt2_model(tokens, (wte, wpe, block_kparams, lnf_w, lnf_b), NH,
                        seq_tile=TQ)
    logits = jax.block_until_ready(logits)
    logits_ref = gpt2_model_ref(tokens, (wte, wpe, raw_blocks, lnf_w, lnf_b), NH)
    assert logits.shape == (B, S, V)
    assert jnp.allclose(logits, logits_ref, atol=3e-2, rtol=3e-2), (
        "model mismatch: max |err| = %f"
        % float(jnp.max(jnp.abs(logits - logits_ref))))

    print("KERNEL_OK")
</pallas_src>

<mosaic_0001>
module attributes {stable_mosaic.version = 11 : i64} {
  func.func @gpt2_block_kernel(%arg0: i32, %arg1: i32, %arg2: memref<1x8x32xf32, #tpu.memory_space<vmem>>, %arg3: memref<1x32xf32, #tpu.memory_space<vmem>>, %arg4: memref<1x32xf32, #tpu.memory_space<vmem>>, %arg5: memref<32x96xbf16, #tpu.memory_space<vmem>>, %arg6: memref<1x96xf32, #tpu.memory_space<vmem>>, %arg7: memref<32x32xbf16, #tpu.memory_space<vmem>>, %arg8: memref<1x32xf32, #tpu.memory_space<vmem>>, %arg9: memref<1x32xf32, #tpu.memory_space<vmem>>, %arg10: memref<1x32xf32, #tpu.memory_space<vmem>>, %arg11: memref<32x128xbf16, #tpu.memory_space<vmem>>, %arg12: memref<1x128xf32, #tpu.memory_space<vmem>>, %arg13: memref<128x32xbf16, #tpu.memory_space<vmem>>, %arg14: memref<1x32xf32, #tpu.memory_space<vmem>>, %arg15: memref<1x8x32xf32, #tpu.memory_space<vmem>>, %arg16: memref<16x32xbf16, #tpu.memory_space<vmem>>, %arg17: memref<16x32xbf16, #tpu.memory_space<vmem>>) attributes {dimension_semantics = [#tpu.dimension_semantics<parallel>, #tpu.dimension_semantics<arbitrary>], iteration_bounds = array<i64: 2, 2>, scalar_prefetch = 0 : i64, scratch_operands = 2 : i64, tpu.core_type = #tpu.core_type<tc>, window_params = [{transform_indices = @transform_0, window_bounds = array<i64: 1, 8, 32>}, {pipeline_mode = #tpu.pipeline_mode<synchronous>, transform_indices = @transform_1, window_bounds = array<i64: 1, 32>}, {pipeline_mode = #tpu.pipeline_mode<synchronous>, transform_indices = @transform_2, window_bounds = array<i64: 1, 32>}, {pipeline_mode = #tpu.pipeline_mode<synchronous>, transform_indices = @transform_3, window_bounds = array<i64: 32, 96>}, {pipeline_mode = #tpu.pipeline_mode<synchronous>, transform_indices = @transform_4, window_bounds = array<i64: 1, 96>}, {pipeline_mode = #tpu.pipeline_mode<synchronous>, transform_indices = @transform_5, window_bounds = array<i64: 32, 32>}, {pipeline_mode = #tpu.pipeline_mode<synchronous>, transform_indices = @transform_6, window_bounds = array<i64: 1, 32>}, {pipeline_mode = #tpu.pipeline_mode<synchronous>, transform_indices = @transform_7, window_bounds = array<i64: 1, 32>}, {pipeline_mode = #tpu.pipeline_mode<synchronous>, transform_indices = @transform_8, window_bounds = array<i64: 1, 32>}, {pipeline_mode = #tpu.pipeline_mode<synchronous>, transform_indices = @transform_9, window_bounds = array<i64: 32, 128>}, {pipeline_mode = #tpu.pipeline_mode<synchronous>, transform_indices = @transform_10, window_bounds = array<i64: 1, 128>}, {pipeline_mode = #tpu.pipeline_mode<synchronous>, transform_indices = @transform_11, window_bounds = array<i64: 128, 32>}, {pipeline_mode = #tpu.pipeline_mode<synchronous>, transform_indices = @transform_12, window_bounds = array<i64: 1, 32>}, {transform_indices = @transform_13, window_bounds = array<i64: 1, 8, 32>}]} {
    %c0 = arith.constant 0 : index
    %c0_0 = arith.constant 0 : index
    %c0_1 = arith.constant 0 : index
    %0 = vector.load %arg2[%c0, %c0_0, %c0_1] : memref<1x8x32xf32, #tpu.memory_space<vmem>>, vector<1x8x32xf32>
    %1 = vector.shape_cast %0 : vector<1x8x32xf32> to vector<8x32xf32>
    %c0_2 = arith.constant 0 : index
    %c0_3 = arith.constant 0 : index
    %2 = vector.load %arg3[%c0_2, %c0_3] : memref<1x32xf32, #tpu.memory_space<vmem>>, vector<1x32xf32>
    %c0_4 = arith.constant 0 : index
    %c0_5 = arith.constant 0 : index
    %3 = vector.load %arg4[%c0_4, %c0_5] : memref<1x32xf32, #tpu.memory_space<vmem>>, vector<1x32xf32>
    %cst = arith.constant dense<0.000000e+00> : vector<8xf32>
    %4 = vector.multi_reduction <add>, %1, %cst [1] : vector<8x32xf32> to vector<8xf32>
    %5 = vector.shape_cast %4 : vector<8xf32> to vector<8x1xf32>
    %cst_6 = arith.constant 3.200000e+01 : f32
    %6 = vector.broadcast %cst_6 : f32 to vector<8x1xf32>
    %7 = arith.divf %5, %6 : vector<8x1xf32>
    %8 = vector.broadcast %7 : vector<8x1xf32> to vector<8x32xf32>
    %9 = arith.subf %1, %8 : vector<8x32xf32>
    %10 = arith.mulf %9, %9 : vector<8x32xf32>
    %cst_7 = arith.constant dense<0.000000e+00> : vector<8xf32>
    %11 = vector.multi_reduction <add>, %10, %cst_7 [1] : vector<8x32xf32> to vector<8xf32>
    %12 = vector.shape_cast %11 : vector<8xf32> to vector<8x1xf32>
    %cst_8 = arith.constant 3.200000e+01 : f32
    %13 = vector.broadcast %cst_8 : f32 to vector<8x1xf32>
    %14 = arith.divf %12, %13 : vector<8x1xf32>
    %15 = vector.broadcast %7 : vector<8x1xf32> to vector<8x32xf32>
    %16 = arith.subf %1, %15 : vector<8x32xf32>
    %cst_9 = arith.constant 9.99999974E-6 : f32
    %17 = vector.broadcast %cst_9 : f32 to vector<8x1xf32>
    %18 = arith.addf %14, %17 : vector<8x1xf32>
    %19 = math.sqrt %18 : vector<8x1xf32>
    %20 = vector.broadcast %19 : vector<8x1xf32> to vector<8x32xf32>
    %21 = arith.divf %16, %20 : vector<8x32xf32>
    %22 = vector.broadcast %2 : vector<1x32xf32> to vector<8x32xf32>
    %23 = arith.mulf %21, %22 : vector<8x32xf32>
    %24 = vector.broadcast %3 : vector<1x32xf32> to vector<8x32xf32>
    %25 = arith.addf %23, %24 : vector<8x32xf32>
    %26 = arith.truncf %25 : vector<8x32xf32> to vector<8x32xbf16>
    %c0_10 = arith.constant 0 : index
    %c0_11 = arith.constant 0 : index
    %27 = vector.load %arg5[%c0_10, %c0_11] : memref<32x96xbf16, #tpu.memory_space<vmem>>, vector<32x96xbf16>
    %cst_12 = arith.constant dense<0.000000e+00> : vector<8x96xf32>
    %28 = tpu.matmul %26, %27, %cst_12 {dimension_numbers = #tpu.dot_dimension_numbers<[1], [0], [0], [1], [0, 0, 1, 1], [], []>} : vector<8x32xbf16>, vector<32x96xbf16>, vector<8x96xf32> -> vector<8x96xf32>
    %c0_13 = arith.constant 0 : index
    %c0_14 = arith.constant 0 : index
    %29 = vector.load %arg6[%c0_13, %c0_14] : memref<1x96xf32, #tpu.memory_space<vmem>>, vector<1x96xf32>
    %30 = vector.broadcast %29 : vector<1x96xf32> to vector<8x96xf32>
    %31 = arith.addf %28, %30 : vector<8x96xf32>
    %32 = vector.extract_strided_slice %31 {offsets = [0, 0], sizes = [8, 32], strides = [1, 1]} : vector<8x96xf32> to vector<8x32xf32>
    %cst_15 = arith.constant 0.353553385 : f32
    %33 = vector.broadcast %cst_15 : f32 to vector<8x32xf32>
    %34 = arith.mulf %32, %33 : vector<8x32xf32>
    %35 = vector.extract_strided_slice %31 {offsets = [0, 32], sizes = [8, 32], strides = [1, 1]} : vector<8x96xf32> to vector<8x32xf32>
    %36 = arith.truncf %35 : vector<8x32xf32> to vector<8x32xbf16>
    %37 = vector.extract_strided_slice %31 {offsets = [0, 64], sizes = [8, 32], strides = [1, 1]} : vector<8x96xf32> to vector<8x32xf32>
    %38 = arith.truncf %37 : vector<8x32xf32> to vector<8x32xbf16>
    %c8_i32 = arith.constant 8 : i32
    %39 = arith.muli %arg1, %c8_i32 : i32
    %40 = tpu.assume_multiple %39, 8 : i32
    %41 = arith.index_cast %40 : i32 to index
    %c0_16 = arith.constant 0 : index
    %42 = vector.load %arg16[%41, %c0_16] : memref<16x32xbf16, #tpu.memory_space<vmem>>, vector<8x32xbf16>
    tpu.vector_store %arg16[%41, %c0_16], %36 {strides = array<i32>} : memref<16x32xbf16, #tpu.memory_space<vmem>>, vector<8x32xbf16>,
    %43 = arith.index_cast %40 : i32 to index
    %c0_17 = arith.constant 0 : index
    %44 = vector.load %arg17[%43, %c0_17] : memref<16x32xbf16, #tpu.memory_space<vmem>>, vector<8x32xbf16>
    tpu.vector_store %arg17[%43, %c0_17], %38 {strides = array<i32>} : memref<16x32xbf16, #tpu.memory_space<vmem>>, vector<8x32xbf16>,
    %45 = tpu.iota {dimensions = array<i32: 0>} : vector<8x1xi32>
    %46 = tpu.iota {dimensions = array<i32: 1>} : vector<1x8xi32>
    %47 = vector.broadcast %46 : vector<1x8xi32> to vector<8x8xi32>
    %48 = vector.broadcast %45 : vector<8x1xi32> to vector<8x8xi32>
    %49 = arith.cmpi sgt, %47, %48 : vector<8x8xi32>
    %50 = vector.extract_strided_slice %34 {offsets = [0, 0], sizes = [8, 8], strides = [1, 1]} : vector<8x32xf32> to vector<8x8xf32>
    %51 = arith.truncf %50 : vector<8x8xf32> to vector<8x8xbf16>
    %cst_18 = arith.constant -1.000000e+30 : f32
    %52 = vector.broadcast %cst_18 : f32 to vector<8x1xf32>
    %cst_19 = arith.constant 0.000000e+00 : f32
    %53 = vector.broadcast %cst_19 : f32 to vector<8x1xf32>
    %cst_20 = arith.constant 0.000000e+00 : f32
    %54 = vector.broadcast %cst_20 : f32 to vector<8x8xf32>
    %c0_i32 = arith.constant 0 : i32
    %55 = arith.subi %arg1, %c0_i32 : i32
    %56 = arith.addi %c0_i32, %55 : i32
    %c1_i32 = arith.constant 1 : i32
    %57:3 = scf.for %arg18 = %c0_i32 to %56 step %c1_i32 iter_args(%arg19 = %52, %arg20 = %53, %arg21 = %54) -> (vector<8x1xf32>, vector<8x1xf32>, vector<8x8xf32>)  : i32 {
      %c8_i32_86 = arith.constant 8 : i32
      %241 = arith.muli %arg18, %c8_i32_86 : i32
      %242 = tpu.assume_multiple %241, 8 : i32
      %243 = arith.index_cast %242 : i32 to index
      %c0_87 = arith.constant 0 : index
      %244 = vector.load %arg16[%243, %c0_87] : memref<16x32xbf16, #tpu.memory_space<vmem>>, vector<8x8xbf16>
      %245 = arith.index_cast %242 : i32 to index
      %c0_88 = arith.constant 0 : index
      %246 = vector.load %arg17[%245, %c0_88] : memref<16x32xbf16, #tpu.memory_space<vmem>>, vector<8x8xbf16>
      %cst_89 = arith.constant dense<0.000000e+00> : vector<8x8xf32>
      %247 = tpu.matmul %51, %244, %cst_89 {dimension_numbers = #tpu.dot_dimension_numbers<[1], [1], [0], [0], [0, 0, 1, 0], [], []>} : vector<8x8xbf16>, vector<8x8xbf16>, vector<8x8xf32> -> vector<8x8xf32>
      %cst_90 = arith.constant dense<0xFF800000> : vector<8xf32>
      %248 = vector.multi_reduction <maximumf>, %247, %cst_90 [1] : vector<8x8xf32> to vector<8xf32>
      %249 = vector.shape_cast %248 : vector<8xf32> to vector<8x1xf32>
      %250 = arith.maximumf %arg19, %249 : vector<8x1xf32>
      %251 = arith.subf %arg19, %250 : vector<8x1xf32>
      %252 = math.exp %251 : vector<8x1xf32>
      %253 = vector.broadcast %250 : vector<8x1xf32> to vector<8x8xf32>
      %254 = arith.subf %247, %253 : vector<8x8xf32>
      %255 = math.exp %254 : vector<8x8xf32>
      %256 = arith.mulf %252, %arg20 : vector<8x1xf32>
      %cst_91 = arith.constant dense<0.000000e+00> : vector<8xf32>
      %257 = vector.multi_reduction <add>, %255, %cst_91 [1] : vector<8x8xf32> to vector<8xf32>
      %258 = vector.shape_cast %257 : vector<8xf32> to vector<8x1xf32>
      %259 = arith.addf %256, %258 : vector<8x1xf32>
      %260 = vector.broadcast %252 : vector<8x1xf32> to vector<8x8xf32>
      %261 = arith.mulf %260, %arg21 : vector<8x8xf32>
      %262 = arith.truncf %255 : vector<8x8xf32> to vector<8x8xbf16>
      %cst_92 = arith.constant dense<0.000000e+00> : vector<8x8xf32>
      %263 = tpu.matmul %262, %246, %cst_92 {dimension_numbers = #tpu.dot_dimension_numbers<[1], [0], [0], [1], [0, 0, 1, 1], [], []>} : vector<8x8xbf16>, vector<8x8xbf16>, vector<8x8xf32> -> vector<8x8xf32>
      %264 = arith.addf %261, %263 : vector<8x8xf32>
      scf.yield %250, %259, %264 : vector<8x1xf32>, vector<8x1xf32>, vector<8x8xf32>
    }
    %58 = vector.extract_strided_slice %36 {offsets = [0, 0], sizes = [8, 8], strides = [1, 1]} : vector<8x32xbf16> to vector<8x8xbf16>
    %cst_21 = arith.constant dense<0.000000e+00> : vector<8x8xf32>
    %59 = tpu.matmul %51, %58, %cst_21 {dimension_numbers = #tpu.dot_dimension_numbers<[1], [1], [0], [0], [0, 0, 1, 0], [], []>} : vector<8x8xbf16>, vector<8x8xbf16>, vector<8x8xf32> -> vector<8x8xf32>
    %cst_22 = arith.constant -1.000000e+30 : f32
    %60 = vector.broadcast %cst_22 : f32 to vector<8x8xf32>
    %61 = arith.select %49, %60, %59 : vector<8x8xi1>, vector<8x8xf32>
    %62 = vector.extract_strided_slice %38 {offsets = [0, 0], sizes = [8, 8], strides = [1, 1]} : vector<8x32xbf16> to vector<8x8xbf16>
    %cst_23 = arith.constant dense<0xFF800000> : vector<8xf32>
    %63 = vector.multi_reduction <maximumf>, %61, %cst_23 [1] : vector<8x8xf32> to vector<8xf32>
    %64 = vector.shape_cast %63 : vector<8xf32> to vector<8x1xf32>
    %65 = arith.maximumf %57#0, %64 : vector<8x1xf32>
    %66 = arith.subf %57#0, %65 : vector<8x1xf32>
    %67 = math.exp %66 : vector<8x1xf32>
    %68 = vector.broadcast %65 : vector<8x1xf32> to vector<8x8xf32>
    %69 = arith.subf %61, %68 : vector<8x8xf32>
    %70 = math.exp %69 : vector<8x8xf32>
    %71 = arith.mulf %67, %57#1 : vector<8x1xf32>
    %cst_24 = arith.constant dense<0.000000e+00> : vector<8xf32>
    %72 = vector.multi_reduction <add>, %70, %cst_24 [1] : vector<8x8xf32> to vector<8xf32>
    %73 = vector.shape_cast %72 : vector<8xf32> to vector<8x1xf32>
    %74 = arith.addf %71, %73 : vector<8x1xf32>
    %75 = vector.broadcast %67 : vector<8x1xf32> to vector<8x8xf32>
    %76 = arith.mulf %75, %57#2 : vector<8x8xf32>
    %77 = arith.truncf %70 : vector<8x8xf32> to vector<8x8xbf16>
    %cst_25 = arith.constant dense<0.000000e+00> : vector<8x8xf32>
    %78 = tpu.matmul %77, %62, %cst_25 {dimension_numbers = #tpu.dot_dimension_numbers<[1], [0], [0], [1], [0, 0, 1, 1], [], []>} : vector<8x8xbf16>, vector<8x8xbf16>, vector<8x8xf32> -> vector<8x8xf32>
    %79 = arith.addf %76, %78 : vector<8x8xf32>
    %80 = tpu.reciprocal %74 {approx = true} : vector<8x1xf32> -> vector<8x1xf32>
    %81 = vector.broadcast %80 : vector<8x1xf32> to vector<8x8xf32>
    %82 = arith.mulf %79, %81 : vector<8x8xf32>
    %83 = arith.truncf %82 : vector<8x8xf32> to vector<8x8xbf16>
    %84 = vector.extract_strided_slice %34 {offsets = [0, 8], sizes = [8, 8], strides = [1, 1]} : vector<8x32xf32> to vector<8x8xf32>
    %85 = arith.truncf %84 : vector<8x8xf32> to vector<8x8xbf16>
    %cst_26 = arith.constant -1.000000e+30 : f32
    %86 = vector.broadcast %cst_26 : f32 to vector<8x1xf32>
    %cst_27 = arith.constant 0.000000e+00 : f32
    %87 = vector.broadcast %cst_27 : f32 to vector<8x1xf32>
    %cst_28 = arith.constant 0.000000e+00 : f32
    %88 = vector.broadcast %cst_28 : f32 to vector<8x8xf32>
    %c0_i32_29 = arith.constant 0 : i32
    %89 = arith.subi %arg1, %c0_i32_29 : i32
    %90 = arith.addi %c0_i32_29, %89 : i32
    %c1_i32_30 = arith.constant 1 : i32
    %91:3 = scf.for %arg18 = %c0_i32_29 to %90 step %c1_i32_30 iter_args(%arg19 = %86, %arg20 = %87, %arg21 = %88) -> (vector<8x1xf32>, vector<8x1xf32>, vector<8x8xf32>)  : i32 {
      %c8_i32_86 = arith.constant 8 : i32
      %241 = arith.muli %arg18, %c8_i32_86 : i32
      %242 = tpu.assume_multiple %241, 8 : i32
      %243 = arith.index_cast %242 : i32 to index
      %c8 = arith.constant 8 : index
      %244 = vector.load %arg16[%243, %c8] : memref<16x32xbf16, #tpu.memory_space<vmem>>, vector<8x8xbf16>
      %245 = arith.index_cast %242 : i32 to index
      %c8_87 = arith.constant 8 : index
      %246 = vector.load %arg17[%245, %c8_87] : memref<16x32xbf16, #tpu.memory_space<vmem>>, vector<8x8xbf16>
      %cst_88 = arith.constant dense<0.000000e+00> : vector<8x8xf32>
      %247 = tpu.matmul %85, %244, %cst_88 {dimension_numbers = #tpu.dot_dimension_numbers<[1], [1], [0], [0], [0, 0, 1, 0], [], []>} : vector<8x8xbf16>, vector<8x8xbf16>, vector<8x8xf32> -> vector<8x8xf32>
      %cst_89 = arith.constant dense<0xFF800000> : vector<8xf32>
      %248 = vector.multi_reduction <maximumf>, %247, %cst_89 [1] : vector<8x8xf32> to vector<8xf32>
      %249 = vector.shape_cast %248 : vector<8xf32> to vector<8x1xf32>
      %250 = arith.maximumf %arg19, %249 : vector<8x1xf32>
      %251 = arith.subf %arg19, %250 : vector<8x1xf32>
      %252 = math.exp %251 : vector<8x1xf32>
      %253 = vector.broadcast %250 : vector<8x1xf32> to vector<8x8xf32>
      %254 = arith.subf %247, %253 : vector<8x8xf32>
      %255 = math.exp %254 : vector<8x8xf32>
      %256 = arith.mulf %252, %arg20 : vector<8x1xf32>
      %cst_90 = arith.constant dense<0.000000e+00> : vector<8xf32>
      %257 = vector.multi_reduction <add>, %255, %cst_90 [1] : vector<8x8xf32> to vector<8xf32>
      %258 = vector.shape_cast %257 : vector<8xf32> to vector<8x1xf32>
      %259 = arith.addf %256, %258 : vector<8x1xf32>
      %260 = vector.broadcast %252 : vector<8x1xf32> to vector<8x8xf32>
      %261 = arith.mulf %260, %arg21 : vector<8x8xf32>
      %262 = arith.truncf %255 : vector<8x8xf32> to vector<8x8xbf16>
      %cst_91 = arith.constant dense<0.000000e+00> : vector<8x8xf32>
      %263 = tpu.matmul %262, %246, %cst_91 {dimension_numbers = #tpu.dot_dimension_numbers<[1], [0], [0], [1], [0, 0, 1, 1], [], []>} : vector<8x8xbf16>, vector<8x8xbf16>, vector<8x8xf32> -> vector<8x8xf32>
      %264 = arith.addf %261, %263 : vector<8x8xf32>
      scf.yield %250, %259, %264 : vector<8x1xf32>, vector<8x1xf32>, vector<8x8xf32>
    }
    %92 = vector.extract_strided_slice %36 {offsets = [0, 8], sizes = [8, 8], strides = [1, 1]} : vector<8x32xbf16> to vector<8x8xbf16>
    %cst_31 = arith.constant dense<0.000000e+00> : vector<8x8xf32>
    %93 = tpu.matmul %85, %92, %cst_31 {dimension_numbers = #tpu.dot_dimension_numbers<[1], [1], [0], [0], [0, 0, 1, 0], [], []>} : vector<8x8xbf16>, vector<8x8xbf16>, vector<8x8xf32> -> vector<8x8xf32>
    %cst_32 = arith.constant -1.000000e+30 : f32
    %94 = vector.broadcast %cst_32 : f32 to vector<8x8xf32>
    %95 = arith.select %49, %94, %93 : vector<8x8xi1>, vector<8x8xf32>
    %96 = vector.extract_strided_slice %38 {offsets = [0, 8], sizes = [8, 8], strides = [1, 1]} : vector<8x32xbf16> to vector<8x8xbf16>
    %cst_33 = arith.constant dense<0xFF800000> : vector<8xf32>
    %97 = vector.multi_reduction <maximumf>, %95, %cst_33 [1] : vector<8x8xf32> to vector<8xf32>
    %98 = vector.shape_cast %97 : vector<8xf32> to vector<8x1xf32>
    %99 = arith.maximumf %91#0, %98 : vector<8x1xf32>
    %100 = arith.subf %91#0, %99 : vector<8x1xf32>
    %101 = math.exp %100 : vector<8x1xf32>
    %102 = vector.broadcast %99 : vector<8x1xf32> to vector<8x8xf32>
    %103 = arith.subf %95, %102 : vector<8x8xf32>
    %104 = math.exp %103 : vector<8x8xf32>
    %105 = arith.mulf %101, %91#1 : vector<8x1xf32>
    %cst_34 = arith.constant dense<0.000000e+00> : vector<8xf32>
    %106 = vector.multi_reduction <add>, %104, %cst_34 [1] : vector<8x8xf32> to vector<8xf32>
    %107 = vector.shape_cast %106 : vector<8xf32> to vector<8x1xf32>
    %108 = arith.addf %105, %107 : vector<8x1xf32>
    %109 = vector.broadcast %101 : vector<8x1xf32> to vector<8x8xf32>
    %110 = arith.mulf %109, %91#2 : vector<8x8xf32>
    %111 = arith.truncf %104 : vector<8x8xf32> to vector<8x8xbf16>
    %cst_35 = arith.constant dense<0.000000e+00> : vector<8x8xf32>
    %112 = tpu.matmul %111, %96, %cst_35 {dimension_numbers = #tpu.dot_dimension_numbers<[1], [0], [0], [1], [0, 0, 1, 1], [], []>} : vector<8x8xbf16>, vector<8x8xbf16>, vector<8x8xf32> -> vector<8x8xf32>
    %113 = arith.addf %110, %112 : vector<8x8xf32>
    %114 = tpu.reciprocal %108 {approx = true} : vector<8x1xf32> -> vector<8x1xf32>
    %115 = vector.broadcast %114 : vector<8x1xf32> to vector<8x8xf32>
    %116 = arith.mulf %113, %115 : vector<8x8xf32>
    %117 = arith.truncf %116 : vector<8x8xf32> to vector<8x8xbf16>
    %118 = vector.extract_strided_slice %34 {offsets = [0, 16], sizes = [8, 8], strides = [1, 1]} : vector<8x32xf32> to vector<8x8xf32>
    %119 = arith.truncf %118 : vector<8x8xf32> to vector<8x8xbf16>
    %cst_36 = arith.constant -1.000000e+30 : f32
    %120 = vector.broadcast %cst_36 : f32 to vector<8x1xf32>
    %cst_37 = arith.constant 0.000000e+00 : f32
    %121 = vector.broadcast %cst_37 : f32 to vector<8x1xf32>
    %cst_38 = arith.constant 0.000000e+00 : f32
    %122 = vector.broadcast %cst_38 : f32 to vector<8x8xf32>
    %c0_i32_39 = arith.constant 0 : i32
    %123 = arith.subi %arg1, %c0_i32_39 : i32
    %124 = arith.addi %c0_i32_39, %123 : i32
    %c1_i32_40 = arith.constant 1 : i32
    %125:3 = scf.for %arg18 = %c0_i32_39 to %124 step %c1_i32_40 iter_args(%arg19 = %120, %arg20 = %121, %arg21 = %122) -> (vector<8x1xf32>, vector<8x1xf32>, vector<8x8xf32>)  : i32 {
      %c8_i32_86 = arith.constant 8 : i32
      %241 = arith.muli %arg18, %c8_i32_86 : i32
      %242 = tpu.assume_multiple %241, 8 : i32
      %243 = arith.index_cast %242 : i32 to index
      %c16 = arith.constant 16 : index
      %244 = vector.load %arg16[%243, %c16] : memref<16x32xbf16, #tpu.memory_space<vmem>>, vector<8x8xbf16>
      %245 = arith.index_cast %242 : i32 to index
      %c16_87 = arith.constant 16 : index
      %246 = vector.load %arg17[%245, %c16_87] : memref<16x32xbf16, #tpu.memory_space<vmem>>, vector<8x8xbf16>
      %cst_88 = arith.constant dense<0.000000e+00> : vector<8x8xf32>
      %247 = tpu.matmul %119, %244, %cst_88 {dimension_numbers = #tpu.dot_dimension_numbers<[1], [1], [0], [0], [0, 0, 1, 0], [], []>} : vector<8x8xbf16>, vector<8x8xbf16>, vector<8x8xf32> -> vector<8x8xf32>
      %cst_89 = arith.constant dense<0xFF800000> : vector<8xf32>
      %248 = vector.multi_reduction <maximumf>, %247, %cst_89 [1] : vector<8x8xf32> to vector<8xf32>
      %249 = vector.shape_cast %248 : vector<8xf32> to vector<8x1xf32>
      %250 = arith.maximumf %arg19, %249 : vector<8x1xf32>
      %251 = arith.subf %arg19, %250 : vector<8x1xf32>
      %252 = math.exp %251 : vector<8x1xf32>
      %253 = vector.broadcast %250 : vector<8x1xf32> to vector<8x8xf32>
      %254 = arith.subf %247, %253 : vector<8x8xf32>
      %255 = math.exp %254 : vector<8x8xf32>
      %256 = arith.mulf %252, %arg20 : vector<8x1xf32>
      %cst_90 = arith.constant dense<0.000000e+00> : vector<8xf32>
      %257 = vector.multi_reduction <add>, %255, %cst_90 [1] : vector<8x8xf32> to vector<8xf32>
      %258 = vector.shape_cast %257 : vector<8xf32> to vector<8x1xf32>
      %259 = arith.addf %256, %258 : vector<8x1xf32>
      %260 = vector.broadcast %252 : vector<8x1xf32> to vector<8x8xf32>
      %261 = arith.mulf %260, %arg21 : vector<8x8xf32>
      %262 = arith.truncf %255 : vector<8x8xf32> to vector<8x8xbf16>
      %cst_91 = arith.constant dense<0.000000e+00> : vector<8x8xf32>
      %263 = tpu.matmul %262, %246, %cst_91 {dimension_numbers = #tpu.dot_dimension_numbers<[1], [0], [0], [1], [0, 0, 1, 1], [], []>} : vector<8x8xbf16>, vector<8x8xbf16>, vector<8x8xf32> -> vector<8x8xf32>
      %264 = arith.addf %261, %263 : vector<8x8xf32>
      scf.yield %250, %259, %264 : vector<8x1xf32>, vector<8x1xf32>, vector<8x8xf32>
    }
    %126 = vector.extract_strided_slice %36 {offsets = [0, 16], sizes = [8, 8], strides = [1, 1]} : vector<8x32xbf16> to vector<8x8xbf16>
    %cst_41 = arith.constant dense<0.000000e+00> : vector<8x8xf32>
    %127 = tpu.matmul %119, %126, %cst_41 {dimension_numbers = #tpu.dot_dimension_numbers<[1], [1], [0], [0], [0, 0, 1, 0], [], []>} : vector<8x8xbf16>, vector<8x8xbf16>, vector<8x8xf32> -> vector<8x8xf32>
    %cst_42 = arith.constant -1.000000e+30 : f32
    %128 = vector.broadcast %cst_42 : f32 to vector<8x8xf32>
    %129 = arith.select %49, %128, %127 : vector<8x8xi1>, vector<8x8xf32>
    %130 = vector.extract_strided_slice %38 {offsets = [0, 16], sizes = [8, 8], strides = [1, 1]} : vector<8x32xbf16> to vector<8x8xbf16>
    %cst_43 = arith.constant dense<0xFF800000> : vector<8xf32>
    %131 = vector.multi_reduction <maximumf>, %129, %cst_43 [1] : vector<8x8xf32> to vector<8xf32>
    %132 = vector.shape_cast %131 : vector<8xf32> to vector<8x1xf32>
    %133 = arith.maximumf %125#0, %132 : vector<8x1xf32>
    %134 = arith.subf %125#0, %133 : vector<8x1xf32>
    %135 = math.exp %134 : vector<8x1xf32>
    %136 = vector.broadcast %133 : vector<8x1xf32> to vector<8x8xf32>
    %137 = arith.subf %129, %136 : vector<8x8xf32>
    %138 = math.exp %137 : vector<8x8xf32>
    %139 = arith.mulf %135, %125#1 : vector<8x1xf32>
    %cst_44 = arith.constant dense<0.000000e+00> : vector<8xf32>
    %140 = vector.multi_reduction <add>, %138, %cst_44 [1] : vector<8x8xf32> to vector<8xf32>
    %141 = vector.shape_cast %140 : vector<8xf32> to vector<8x1xf32>
    %142 = arith.addf %139, %141 : vector<8x1xf32>
    %143 = vector.broadcast %135 : vector<8x1xf32> to vector<8x8xf32>
    %144 = arith.mulf %143, %125#2 : vector<8x8xf32>
    %145 = arith.truncf %138 : vector<8x8xf32> to vector<8x8xbf16>
    %cst_45 = arith.constant dense<0.000000e+00> : vector<8x8xf32>
    %146 = tpu.matmul %145, %130, %cst_45 {dimension_numbers = #tpu.dot_dimension_numbers<[1], [0], [0], [1], [0, 0, 1, 1], [], []>} : vector<8x8xbf16>, vector<8x8xbf16>, vector<8x8xf32> -> vector<8x8xf32>
    %147 = arith.addf %144, %146 : vector<8x8xf32>
    %148 = tpu.reciprocal %142 {approx = true} : vector<8x1xf32> -> vector<8x1xf32>
    %149 = vector.broadcast %148 : vector<8x1xf32> to vector<8x8xf32>
    %150 = arith.mulf %147, %149 : vector<8x8xf32>
    %151 = arith.truncf %150 : vector<8x8xf32> to vector<8x8xbf16>
    %152 = vector.extract_strided_slice %34 {offsets = [0, 24], sizes = [8, 8], strides = [1, 1]} : vector<8x32xf32> to vector<8x8xf32>
    %153 = arith.truncf %152 : vector<8x8xf32> to vector<8x8xbf16>
    %cst_46 = arith.constant -1.000000e+30 : f32
    %154 = vector.broadcast %cst_46 : f32 to vector<8x1xf32>
    %cst_47 = arith.constant 0.000000e+00 : f32
    %155 = vector.broadcast %cst_47 : f32 to vector<8x1xf32>
    %cst_48 = arith.constant 0.000000e+00 : f32
    %156 = vector.broadcast %cst_48 : f32 to vector<8x8xf32>
    %c0_i32_49 = arith.constant 0 : i32
    %157 = arith.subi %arg1, %c0_i32_49 : i32
    %158 = arith.addi %c0_i32_49, %157 : i32
    %c1_i32_50 = arith.constant 1 : i32
    %159:3 = scf.for %arg18 = %c0_i32_49 to %158 step %c1_i32_50 iter_args(%arg19 = %154, %arg20 = %155, %arg21 = %156) -> (vector<8x1xf32>, vector<8x1xf32>, vector<8x8xf32>)  : i32 {
      %c8_i32_86 = arith.constant 8 : i32
      %241 = arith.muli %arg18, %c8_i32_86 : i32
      %242 = tpu.assume_multiple %241, 8 : i32
      %243 = arith.index_cast %242 : i32 to index
      %c24 = arith.constant 24 : index
      %244 = vector.load %arg16[%243, %c24] : memref<16x32xbf16, #tpu.memory_space<vmem>>, vector<8x8xbf16>
      %245 = arith.index_cast %242 : i32 to index
      %c24_87 = arith.constant 24 : index
      %246 = vector.load %arg17[%245, %c24_87] : memref<16x32xbf16, #tpu.memory_space<vmem>>, vector<8x8xbf16>
      %cst_88 = arith.constant dense<0.000000e+00> : vector<8x8xf32>
      %247 = tpu.matmul %153, %244, %cst_88 {dimension_numbers = #tpu.dot_dimension_numbers<[1], [1], [0], [0], [0, 0, 1, 0], [], []>} : vector<8x8xbf16>, vector<8x8xbf16>, vector<8x8xf32> -> vector<8x8xf32>
      %cst_89 = arith.constant dense<0xFF800000> : vector<8xf32>
      %248 = vector.multi_reduction <maximumf>, %247, %cst_89 [1] : vector<8x8xf32> to vector<8xf32>
      %249 = vector.shape_cast %248 : vector<8xf32> to vector<8x1xf32>
      %250 = arith.maximumf %arg19, %249 : vector<8x1xf32>
      %251 = arith.subf %arg19, %250 : vector<8x1xf32>
      %252 = math.exp %251 : vector<8x1xf32>
      %253 = vector.broadcast %250 : vector<8x1xf32> to vector<8x8xf32>
      %254 = arith.subf %247, %253 : vector<8x8xf32>
      %255 = math.exp %254 : vector<8x8xf32>
      %256 = arith.mulf %252, %arg20 : vector<8x1xf32>
      %cst_90 = arith.constant dense<0.000000e+00> : vector<8xf32>
      %257 = vector.multi_reduction <add>, %255, %cst_90 [1] : vector<8x8xf32> to vector<8xf32>
      %258 = vector.shape_cast %257 : vector<8xf32> to vector<8x1xf32>
      %259 = arith.addf %256, %258 : vector<8x1xf32>
      %260 = vector.broadcast %252 : vector<8x1xf32> to vector<8x8xf32>
      %261 = arith.mulf %260, %arg21 : vector<8x8xf32>
      %262 = arith.truncf %255 : vector<8x8xf32> to vector<8x8xbf16>
      %cst_91 = arith.constant dense<0.000000e+00> : vector<8x8xf32>
      %263 = tpu.matmul %262, %246, %cst_91 {dimension_numbers = #tpu.dot_dimension_numbers<[1], [0], [0], [1], [0, 0, 1, 1], [], []>} : vector<8x8xbf16>, vector<8x8xbf16>, vector<8x8xf32> -> vector<8x8xf32>
      %264 = arith.addf %261, %263 : vector<8x8xf32>
      scf.yield %250, %259, %264 : vector<8x1xf32>, vector<8x1xf32>, vector<8x8xf32>
    }
    %160 = vector.extract_strided_slice %36 {offsets = [0, 24], sizes = [8, 8], strides = [1, 1]} : vector<8x32xbf16> to vector<8x8xbf16>
    %cst_51 = arith.constant dense<0.000000e+00> : vector<8x8xf32>
    %161 = tpu.matmul %153, %160, %cst_51 {dimension_numbers = #tpu.dot_dimension_numbers<[1], [1], [0], [0], [0, 0, 1, 0], [], []>} : vector<8x8xbf16>, vector<8x8xbf16>, vector<8x8xf32> -> vector<8x8xf32>
    %cst_52 = arith.constant -1.000000e+30 : f32
    %162 = vector.broadcast %cst_52 : f32 to vector<8x8xf32>
    %163 = arith.select %49, %162, %161 : vector<8x8xi1>, vector<8x8xf32>
    %164 = vector.extract_strided_slice %38 {offsets = [0, 24], sizes = [8, 8], strides = [1, 1]} : vector<8x32xbf16> to vector<8x8xbf16>
    %cst_53 = arith.constant dense<0xFF800000> : vector<8xf32>
    %165 = vector.multi_reduction <maximumf>, %163, %cst_53 [1] : vector<8x8xf32> to vector<8xf32>
    %166 = vector.shape_cast %165 : vector<8xf32> to vector<8x1xf32>
    %167 = arith.maximumf %159#0, %166 : vector<8x1xf32>
    %168 = arith.subf %159#0, %167 : vector<8x1xf32>
    %169 = math.exp %168 : vector<8x1xf32>
    %170 = vector.broadcast %167 : vector<8x1xf32> to vector<8x8xf32>
    %171 = arith.subf %163, %170 : vector<8x8xf32>
    %172 = math.exp %171 : vector<8x8xf32>
    %173 = arith.mulf %169, %159#1 : vector<8x1xf32>
    %cst_54 = arith.constant dense<0.000000e+00> : vector<8xf32>
    %174 = vector.multi_reduction <add>, %172, %cst_54 [1] : vector<8x8xf32> to vector<8xf32>
    %175 = vector.shape_cast %174 : vector<8xf32> to vector<8x1xf32>
    %176 = arith.addf %173, %175 : vector<8x1xf32>
    %177 = vector.broadcast %169 : vector<8x1xf32> to vector<8x8xf32>
    %178 = arith.mulf %177, %159#2 : vector<8x8xf32>
    %179 = arith.truncf %172 : vector<8x8xf32> to vector<8x8xbf16>
    %cst_55 = arith.constant dense<0.000000e+00> : vector<8x8xf32>
    %180 = tpu.matmul %179, %164, %cst_55 {dimension_numbers = #tpu.dot_dimension_numbers<[1], [0], [0], [1], [0, 0, 1, 1], [], []>} : vector<8x8xbf16>, vector<8x8xbf16>, vector<8x8xf32> -> vector<8x8xf32>
    %181 = arith.addf %178, %180 : vector<8x8xf32>
    %182 = tpu.reciprocal %176 {approx = true} : vector<8x1xf32> -> vector<8x1xf32>
    %183 = vector.broadcast %182 : vector<8x1xf32> to vector<8x8xf32>
    %184 = arith.mulf %181, %183 : vector<8x8xf32>
    %185 = arith.truncf %184 : vector<8x8xf32> to vector<8x8xbf16>
    %186 = tpu.concatenate %83, %117, %151, %185 in 1 : vector<8x8xbf16>, vector<8x8xbf16>, vector<8x8xbf16>, vector<8x8xbf16> -> vector<8x32xbf16>
    %c0_56 = arith.constant 0 : index
    %c0_57 = arith.constant 0 : index
    %187 = vector.load %arg7[%c0_56, %c0_57] : memref<32x32xbf16, #tpu.memory_space<vmem>>, vector<32x32xbf16>
    %cst_58 = arith.constant dense<0.000000e+00> : vector<8x32xf32>
    %188 = tpu.matmul %186, %187, %cst_58 {dimension_numbers = #tpu.dot_dimension_numbers<[1], [0], [0], [1], [0, 0, 1, 1], [], []>} : vector<8x32xbf16>, vector<32x32xbf16>, vector<8x32xf32> -> vector<8x32xf32>
    %c0_59 = arith.constant 0 : index
    %c0_60 = arith.constant 0 : index
    %189 = vector.load %arg8[%c0_59, %c0_60] : memref<1x32xf32, #tpu.memory_space<vmem>>, vector<1x32xf32>
    %190 = vector.broadcast %189 : vector<1x32xf32> to vector<8x32xf32>
    %191 = arith.addf %188, %190 : vector<8x32xf32>
    %192 = arith.addf %1, %191 : vector<8x32xf32>
    %c0_61 = arith.constant 0 : index
    %c0_62 = arith.constant 0 : index
    %193 = vector.load %arg9[%c0_61, %c0_62] : memref<1x32xf32, #tpu.memory_space<vmem>>, vector<1x32xf32>
    %c0_63 = arith.constant 0 : index
    %c0_64 = arith.constant 0 : index
    %194 = vector.load %arg10[%c0_63, %c0_64] : memref<1x32xf32, #tpu.memory_space<vmem>>, vector<1x32xf32>
    %cst_65 = arith.constant dense<0.000000e+00> : vector<8xf32>
    %195 = vector.multi_reduction <add>, %192, %cst_65 [1] : vector<8x32xf32> to vector<8xf32>
    %196 = vector.shape_cast %195 : vector<8xf32> to vector<8x1xf32>
    %cst_66 = arith.constant 3.200000e+01 : f32
    %197 = vector.broadcast %cst_66 : f32 to vector<8x1xf32>
    %198 = arith.divf %196, %197 : vector<8x1xf32>
    %199 = vector.broadcast %198 : vector<8x1xf32> to vector<8x32xf32>
    %200 = arith.subf %192, %199 : vector<8x32xf32>
    %201 = arith.mulf %200, %200 : vector<8x32xf32>
    %cst_67 = arith.constant dense<0.000000e+00> : vector<8xf32>
    %202 = vector.multi_reduction <add>, %201, %cst_67 [1] : vector<8x32xf32> to vector<8xf32>
    %203 = vector.shape_cast %202 : vector<8xf32> to vector<8x1xf32>
    %cst_68 = arith.constant 3.200000e+01 : f32
    %204 = vector.broadcast %cst_68 : f32 to vector<8x1xf32>
    %205 = arith.divf %203, %204 : vector<8x1xf32>
    %206 = vector.broadcast %198 : vector<8x1xf32> to vector<8x32xf32>
    %207 = arith.subf %192, %206 : vector<8x32xf32>
    %cst_69 = arith.constant 9.99999974E-6 : f32
    %208 = vector.broadcast %cst_69 : f32 to vector<8x1xf32>
    %209 = arith.addf %205, %208 : vector<8x1xf32>
    %210 = math.sqrt %209 : vector<8x1xf32>
    %211 = vector.broadcast %210 : vector<8x1xf32> to vector<8x32xf32>
    %212 = arith.divf %207, %211 : vector<8x32xf32>
    %213 = vector.broadcast %193 : vector<1x32xf32> to vector<8x32xf32>
    %214 = arith.mulf %212, %213 : vector<8x32xf32>
    %215 = vector.broadcast %194 : vector<1x32xf32> to vector<8x32xf32>
    %216 = arith.addf %214, %215 : vector<8x32xf32>
    %217 = arith.truncf %216 : vector<8x32xf32> to vector<8x32xbf16>
    %c0_70 = arith.constant 0 : index
    %c0_71 = arith.constant 0 : index
    %218 = vector.load %arg11[%c0_70, %c0_71] : memref<32x128xbf16, #tpu.memory_space<vmem>>, vector<32x128xbf16>
    %cst_72 = arith.constant dense<0.000000e+00> : vector<8x128xf32>
    %219 = tpu.matmul %217, %218, %cst_72 {dimension_numbers = #tpu.dot_dimension_numbers<[1], [0], [0], [1], [0, 0, 1, 1], [], []>} : vector<8x32xbf16>, vector<32x128xbf16>, vector<8x128xf32> -> vector<8x128xf32>
    %c0_73 = arith.constant 0 : index
    %c0_74 = arith.constant 0 : index
    %220 = vector.load %arg12[%c0_73, %c0_74] : memref<1x128xf32, #tpu.memory_space<vmem>>, vector<1x128xf32>
    %221 = vector.broadcast %220 : vector<1x128xf32> to vector<8x128xf32>
    %222 = arith.addf %219, %221 : vector<8x128xf32>
    %cst_75 = arith.constant 5.000000e-01 : f32
    %223 = vector.broadcast %cst_75 : f32 to vector<8x128xf32>
    %224 = arith.mulf %223, %222 : vector<8x128xf32>
    %cst_76 = arith.constant 0.707106769 : f32
    %225 = vector.broadcast %cst_76 : f32 to vector<8x128xf32>
    %226 = arith.mulf %222, %225 : vector<8x128xf32>
    %227 = math.erf %226 : vector<8x128xf32>
    %cst_77 = arith.constant 1.000000e+00 : f32
    %228 = vector.broadcast %cst_77 : f32 to vector<8x128xf32>
    %229 = arith.addf %228, %227 : vector<8x128xf32>
    %230 = arith.mulf %224, %229 : vector<8x128xf32>
    %231 = arith.truncf %230 : vector<8x128xf32> to vector<8x128xbf16>
    %c0_78 = arith.constant 0 : index
    %c0_79 = arith.constant 0 : index
    %232 = vector.load %arg13[%c0_78, %c0_79] : memref<128x32xbf16, #tpu.memory_space<vmem>>, vector<128x32xbf16>
    %cst_80 = arith.constant dense<0.000000e+00> : vector<8x32xf32>
    %233 = tpu.matmul %231, %232, %cst_80 {dimension_numbers = #tpu.dot_dimension_numbers<[1], [0], [0], [1], [0, 0, 1, 1], [], []>} : vector<8x128xbf16>, vector<128x32xbf16>, vector<8x32xf32> -> vector<8x32xf32>
    %c0_81 = arith.constant 0 : index
    %c0_82 = arith.constant 0 : index
    %234 = vector.load %arg14[%c0_81, %c0_82] : memref<1x32xf32, #tpu.memory_space<vmem>>, vector<1x32xf32>
    %235 = vector.broadcast %234 : vector<1x32xf32> to vector<8x32xf32>
    %236 = arith.addf %233, %235 : vector<8x32xf32>
    %237 = arith.addf %192, %236 : vector<8x32xf32>
    %c0_83 = arith.constant 0 : index
    %c0_84 = arith.constant 0 : index
    %c0_85 = arith.constant 0 : index
    %238 = vector.load %arg15[%c0_83, %c0_84, %c0_85] : memref<1x8x32xf32, #tpu.memory_space<vmem>>, vector<1x8x32xf32>
    %239 = vector.shape_cast %238 : vector<1x8x32xf32> to vector<8x32xf32>
    %240 = vector.shape_cast %237 : vector<8x32xf32> to vector<1x8x32xf32>
    tpu.vector_store %arg15[%c0_83, %c0_84, %c0_85], %240 {strides = array<i32>} : memref<1x8x32xf32, #tpu.memory_space<vmem>>, vector<1x8x32xf32>,
    return
  }
  func.func @transform_0(%arg0: i32, %arg1: i32) -> (i32, i32, i32) {
    %c0_i32 = arith.constant 0 : i32
    %c0_i32_0 = arith.constant 0 : i32
    return %arg0, %arg1, %c0_i32 : i32, i32, i32
  }
  func.func @transform_1(%arg0: i32, %arg1: i32) -> (i32, i32) {
    %c0_i32 = arith.constant 0 : i32
    %c0_i32_0 = arith.constant 0 : i32
    %c0_i32_1 = arith.constant 0 : i32
    return %c0_i32, %c0_i32_0 : i32, i32
  }
  func.func @transform_2(%arg0: i32, %arg1: i32) -> (i32, i32) {
    %c0_i32 = arith.constant 0 : i32
    %c0_i32_0 = arith.constant 0 : i32
    %c0_i32_1 = arith.constant 0 : i32
    return %c0_i32, %c0_i32_0 : i32, i32
  }
  func.func @transform_3(%arg0: i32, %arg1: i32) -> (i32, i32) {
    %c0_i32 = arith.constant 0 : i32
    %c0_i32_0 = arith.constant 0 : i32
    %c0_i32_1 = arith.constant 0 : i32
    return %c0_i32, %c0_i32_0 : i32, i32
  }
  func.func @transform_4(%arg0: i32, %arg1: i32) -> (i32, i32) {
    %c0_i32 = arith.constant 0 : i32
    %c0_i32_0 = arith.constant 0 : i32
    %c0_i32_1 = arith.constant 0 : i32
    return %c0_i32, %c0_i32_0 : i32, i32
  }
  func.func @transform_5(%arg0: i32, %arg1: i32) -> (i32, i32) {
    %c0_i32 = arith.constant 0 : i32
    %c0_i32_0 = arith.constant 0 : i32
    %c0_i32_1 = arith.constant 0 : i32
    return %c0_i32, %c0_i32_0 : i32, i32
  }
  func.func @transform_6(%arg0: i32, %arg1: i32) -> (i32, i32) {
    %c0_i32 = arith.constant 0 : i32
    %c0_i32_0 = arith.constant 0 : i32
    %c0_i32_1 = arith.constant 0 : i32
    return %c0_i32, %c0_i32_0 : i32, i32
  }
  func.func @transform_7(%arg0: i32, %arg1: i32) -> (i32, i32) {
    %c0_i32 = arith.constant 0 : i32
    %c0_i32_0 = arith.constant 0 : i32
    %c0_i32_1 = arith.constant 0 : i32
    return %c0_i32, %c0_i32_0 : i32, i32
  }
  func.func @transform_8(%arg0: i32, %arg1: i32) -> (i32, i32) {
    %c0_i32 = arith.constant 0 : i32
    %c0_i32_0 = arith.constant 0 : i32
    %c0_i32_1 = arith.constant 0 : i32
    return %c0_i32, %c0_i32_0 : i32, i32
  }
  func.func @transform_9(%arg0: i32, %arg1: i32) -> (i32, i32) {
    %c0_i32 = arith.constant 0 : i32
    %c0_i32_0 = arith.constant 0 : i32
    %c0_i32_1 = arith.constant 0 : i32
    return %c0_i32, %c0_i32_0 : i32, i32
  }
  func.func @transform_10(%arg0: i32, %arg1: i32) -> (i32, i32) {
    %c0_i32 = arith.constant 0 : i32
    %c0_i32_0 = arith.constant 0 : i32
    %c0_i32_1 = arith.constant 0 : i32
    return %c0_i32, %c0_i32_0 : i32, i32
  }
  func.func @transform_11(%arg0: i32, %arg1: i32) -> (i32, i32) {
    %c0_i32 = arith.constant 0 : i32
    %c0_i32_0 = arith.constant 0 : i32
    %c0_i32_1 = arith.constant 0 : i32
    return %c0_i32, %c0_i32_0 : i32, i32
  }
  func.func @transform_12(%arg0: i32, %arg1: i32) -> (i32, i32) {
    %c0_i32 = arith.constant 0 : i32
    %c0_i32_0 = arith.constant 0 : i32
    %c0_i32_1 = arith.constant 0 : i32
    return %c0_i32, %c0_i32_0 : i32, i32
  }
  func.func @transform_13(%arg0: i32, %arg1: i32) -> (i32, i32, i32) {
    %c0_i32 = arith.constant 0 : i32
    %c0_i32_0 = arith.constant 0 : i32
    return %arg0, %arg1, %c0_i32 : i32, i32, i32
  }
}

</mosaic_0001>

<llo_original>
// kernel: tpu_custom_call.1
$region0: #{tpu_custom_call.1}
  #allocation0 [shape = 'u32[]', space=smem, size = 0x4, offset = 0x4, fixed_abs, tag = 'smem constant byte address 0x4 - core index']
  #allocation1 [shape = 'u32[72,128]{1,0:T(1,128)}', space=vmem, size = 0x9000, scoped, tag = 'internal scratch']
  #allocation2 [shape = 'bf16[16,32]{1,0:T(8,128)(2,1)}', space=vmem, size = 0x1000, scoped, tag = 'scratch operand']
  #allocation3 [shape = 'bf16[16,32]{1,0:T(8,128)(2,1)}', space=vmem, size = 0x1000, scoped, tag = 'scratch operand']
  %s0 = inlined_call_operand.vmem [shape: f32[2,16,32], index: 0, kind: input, shape index: {}]
  %s1 = inlined_call_operand.hbm [shape: f32[1,32], index: 1, kind: input, shape index: {}]
  %s2 = inlined_call_operand.vmem [shape: f32[1,32], index: 2, kind: input, shape index: {}]
  %s3 = inlined_call_operand.vmem [shape: bf16[32,96], index: 3, kind: input, shape index: {}]
  %s4 = inlined_call_operand.vmem [shape: f32[1,96], index: 4, kind: input, shape index: {}]
  %s5 = inlined_call_operand.vmem [shape: bf16[32,32], index: 5, kind: input, shape index: {}]
  %s6 = inlined_call_operand.vmem [shape: f32[1,32], index: 6, kind: input, shape index: {}]
  %s7 = inlined_call_operand.vmem [shape: f32[1,32], index: 7, kind: input, shape index: {}]
  %s8 = inlined_call_operand.vmem [shape: f32[1,32], index: 8, kind: input, shape index: {}]
  %s9 = inlined_call_operand.vmem [shape: bf16[32,128], index: 9, kind: input, shape index: {}]
  %s10 = inlined_call_operand.vmem [shape: f32[1,128], index: 10, kind: input, shape index: {}]
  %s11 = inlined_call_operand.vmem [shape: bf16[128,32], index: 11, kind: input, shape index: {}]
  %s12 = inlined_call_operand.vmem [shape: f32[1,32], index: 12, kind: input, shape index: {}]
  %s13 = inlined_call_operand.hbm [shape: f32[2,16,32], index: 13, kind: output, shape index: {}]
  %s14 = sld [smem:[#allocation0]]
  $region117: #{tpu_custom_call.1} parent=0
    _
  %s16 = ssub.s32 1, %s14
  %s17 = scalar_select 0, %s16, %s14
  $region1: #{tpu_custom_call.1} parent=0
    #allocation4 [shape = 'u8[512]{0}', space=vmem, size = 0x400, scoped, tag = 'input window, operand 1, single buffered']
    #allocation5 [shape = 's32[2]{0}', space=sflag, size = 0x8, scoped, tag = 'scoped memory for tpu_custom_call.1']
    #allocation6 [shape = 's32[2]{0}', space=sflag, size = 0x8, scoped, tag = 'scoped memory for tpu_custom_call.1']
    #allocation7 [shape = 'u8[8192]{0}', space=vmem, size = 0x2000, scoped, tag = 'output window, operand 0']
    %18 = vsyncpa [#allocation5], 0
    %19 = vsyncpa [#allocation6], 0
    %s20 = scalar_lea.sflag [#allocation6], 1
    %21 = vsyncpa %s20, 0
    loop: start=0, step=1, limit=6
    $region2: #{tpu_custom_call.1} parent=1 // loop_pre_header
      _
    $region3: #{tpu_custom_call.1} parent=1 // loop_header
      %s23 = sphi 0, %s27
      %p24 = scmp.ge.s32.totalorder %s23, 6
      %s30 = sphi 0, %s42
      %s31 = sphi 0, %s38
      %s32 = sphi 0, %s30
      %s33 = sphi 0, %s31
      %s34 = sphi 0, %s32
      %s35 = sphi 0, %s33
      %s47 = sphi 0, %s49
      %s50 = sphi 0, %s47
      %s51 = sphi 0, %s50
      %s67 = sphi 0, %s51
      %s71 = sphi 0, %s71
      %s73 = sphi 0, %s71
      %s74 = sphi 0, %s73
      %s88 = sphi 0, %s74
      %s92 = sphi 0, %s92
      %s94 = sphi 0, %s92
      %s95 = sphi 0, %s94
      %s109 = sphi 0, %s95
      %s113 = sphi 0, %s113
      %s115 = sphi 0, %s113
      %s116 = sphi 0, %s115
      %s130 = sphi 0, %s116
      %s134 = sphi 0, %s134
      %s136 = sphi 0, %s134
      %s137 = sphi 0, %s136
      %s151 = sphi 0, %s137
      %s155 = sphi 0, %s155
      %s157 = sphi 0, %s155
      %s158 = sphi 0, %s157
      %s172 = sphi 0, %s158
      %s176 = sphi 0, %s176
      %s178 = sphi 0, %s176
      %s179 = sphi 0, %s178
      %s193 = sphi 0, %s179
      %s197 = sphi 0, %s197
      %s199 = sphi 0, %s197
      %s200 = sphi 0, %s199
      %s214 = sphi 0, %s200
      %s218 = sphi 0, %s218
      %s220 = sphi 0, %s218
      %s221 = sphi 0, %s220
      %s235 = sphi 0, %s221
      %s239 = sphi 0, %s239
      %s241 = sphi 0, %s239
      %s242 = sphi 0, %s241
      %s256 = sphi 0, %s242
      %s260 = sphi 0, %s260
      %s262 = sphi 0, %s260
      %s263 = sphi 0, %s262
      %s277 = sphi 0, %s263
      %s281 = sphi 0, %s281
      %s283 = sphi 0, %s281
      %s284 = sphi 0, %s283
      %s298 = sphi 0, %s284
      %s302 = sphi 0, %s302
      %s304 = sphi 0, %s302
      %s305 = sphi 0, %s304
      %s319 = sphi 0, %s305
      %s327 = sphi 0, %s329
      %s330 = sphi 0, %s327
      %s331 = sphi 0, %s330
      %s347 = sphi 0, %s331
    $region4: #{tpu_custom_call.1} parent=1 // loop_header_branch
      %26 = sbr.rel (%p24) target = $region8
    $region5: #{tpu_custom_call.1} parent=1 // loop_body
      %s28 = ssub.s32 %s23, 1
      %s29 = ssub.s32 %s23, 2
      %s36 = sadd.s32 1, %s31
      %p37 = scmp.ge.s32.totalorder %s36, 2
      %s38 = scalar_select %p37, 0, %s36
      %s39 = sadd.s32 1, %s30
      %s40 = scalar_select %p37, %s39, %s30
      %p41 = scmp.ge.s32.totalorder %s40, 2
      %s42 = scalar_select %p41, 0, %s40
      %s43 = ssub.s32 %s30, %s42
      %s44 = ssub.s32 %s31, %s38
      %s45 = sor.u32 %s43, %s44
      %p46 = scmp.eq.s32.totalorder %s45, 0
      %s48 = sadd.s32 %s47, 1
      %s49 = scalar_select %p46, %s47, %s48
      %p52 = pneg %p46
      %p53 = scmp.eq.s32.totalorder %s23, 3
      %p54 = por %p52, %p53
      %p55 = scmp.ne.s32.totalorder %s47, %s50
      %p56 = scmp.eq.s32.totalorder %s23, 0
      %p57 = por %p55, %p56
      %p58 = scmp.ne.s32.totalorder %s47, %s50
      %p59 = scmp.eq.s32.totalorder %s28, 3
      %p60 = por %p58, %p59
      %p61 = scmp.ne.s32.totalorder %s50, %s51
      %p62 = scmp.eq.s32.totalorder %s28, 0
      %p63 = por %p61, %p62
      %p64 = scmp.ne.s32.totalorder %s50, %s51
      %p65 = scmp.eq.s32.totalorder %s29, 3
      %p66 = por %p64, %p65
      %p68 = scmp.ne.s32.totalorder %s51, %s67
      %p69 = scmp.eq.s32.totalorder %s29, 0
      %p70 = por %p68, %p69
      %s72 = sadd.s32 %s71, 1
      %p75 = scmp.eq.s32.totalorder %s23, 3
      %p76 = scmp.ne.s32.totalorder %s71, %s73
      %p77 = scmp.eq.s32.totalorder %s23, 0
      %p78 = por %p76, %p77
      %p79 = scmp.ne.s32.totalorder %s71, %s73
      %p80 = scmp.eq.s32.totalorder %s28, 3
      %p81 = por %p79, %p80
      %p82 = scmp.ne.s32.totalorder %s73, %s74
      %p83 = scmp.eq.s32.totalorder %s28, 0
      %p84 = por %p82, %p83
      %p85 = scmp.ne.s32.totalorder %s73, %s74
      %p86 = scmp.eq.s32.totalorder %s29, 3
      %p87 = por %p85, %p86
      %p89 = scmp.ne.s32.totalorder %s74, %s88
      %p90 = scmp.eq.s32.totalorder %s29, 0
      %p91 = por %p89, %p90
      %s93 = sadd.s32 %s92, 1
      %p96 = scmp.eq.s32.totalorder %s23, 3
      %p97 = scmp.ne.s32.totalorder %s92, %s94
      %p98 = scmp.eq.s32.totalorder %s23, 0
      %p99 = por %p97, %p98
      %p100 = scmp.ne.s32.totalorder %s92, %s94
      %p101 = scmp.eq.s32.totalorder %s28, 3
      %p102 = por %p100, %p101
      %p103 = scmp.ne.s32.totalorder %s94, %s95
      %p104 = scmp.eq.s32.totalorder %s28, 0
      %p105 = por %p103, %p104
      %p106 = scmp.ne.s32.totalorder %s94, %s95
      %p107 = scmp.eq.s32.totalorder %s29, 3
      %p108 = por %p106, %p107
      %p110 = scmp.ne.s32.totalorder %s95, %s109
      %p111 = scmp.eq.s32.totalorder %s29, 0
      %p112 = por %p110, %p111
      %s114 = sadd.s32 %s113, 1
      %p117 = scmp.eq.s32.totalorder %s23, 3
      %p118 = scmp.ne.s32.totalorder %s113, %s115
      %p119 = scmp.eq.s32.totalorder %s23, 0
      %p120 = por %p118, %p119
      %p121 = scmp.ne.s32.totalorder %s113, %s115
      %p122 = scmp.eq.s32.totalorder %s28, 3
      %p123 = por %p121, %p122
      %p124 = scmp.ne.s32.totalorder %s115, %s116
      %p125 = scmp.eq.s32.totalorder %s28, 0
      %p126 = por %p124, %p125
      %p127 = scmp.ne.s32.totalorder %s115, %s116
      %p128 = scmp.eq.s32.totalorder %s29, 3
      %p129 = por %p127, %p128
      %p131 = scmp.ne.s32.totalorder %s116, %s130
      %p132 = scmp.eq.s32.totalorder %s29, 0
      %p133 = por %p131, %p132
      %s135 = sadd.s32 %s134, 1
      %p138 = scmp.eq.s32.totalorder %s23, 3
      %p139 = scmp.ne.s32.totalorder %s134, %s136
      %p140 = scmp.eq.s32.totalorder %s23, 0
      %p141 = por %p139, %p140
      %p142 = scmp.ne.s32.totalorder %s134, %s136
      %p143 = scmp.eq.s32.totalorder %s28, 3
      %p144 = por %p142, %p143
      %p145 = scmp.ne.s32.totalorder %s136, %s137
      %p146 = scmp.eq.s32.totalorder %s28, 0
      %p147 = por %p145, %p146
      %p148 = scmp.ne.s32.totalorder %s136, %s137
      %p149 = scmp.eq.s32.totalorder %s29, 3
      %p150 = por %p148, %p149
      %p152 = scmp.ne.s32.totalorder %s137, %s151
      %p153 = scmp.eq.s32.totalorder %s29, 0
      %p154 = por %p152, %p153
      %s156 = sadd.s32 %s155, 1
      %p159 = scmp.eq.s32.totalorder %s23, 3
      %p160 = scmp.ne.s32.totalorder %s155, %s157
      %p161 = scmp.eq.s32.totalorder %s23, 0
      %p162 = por %p160, %p161
      %p163 = scmp.ne.s32.totalorder %s155, %s157
      %p164 = scmp.eq.s32.totalorder %s28, 3
      %p165 = por %p163, %p164
      %p166 = scmp.ne.s32.totalorder %s157, %s158
      %p167 = scmp.eq.s32.totalorder %s28, 0
      %p168 = por %p166, %p167
      %p169 = scmp.ne.s32.totalorder %s157, %s158
      %p170 = scmp.eq.s32.totalorder %s29, 3
      %p171 = por %p169, %p170
      %p173 = scmp.ne.s32.totalorder %s158, %s172
      %p174 = scmp.eq.s32.totalorder %s29, 0
      %p175 = por %p173, %p174
      %s177 = sadd.s32 %s176, 1
      %p180 = scmp.eq.s32.totalorder %s23, 3
      %p181 = scmp.ne.s32.totalorder %s176, %s178
      %p182 = scmp.eq.s32.totalorder %s23, 0
      %p183 = por %p181, %p182
      %p184 = scmp.ne.s32.totalorder %s176, %s178
      %p185 = scmp.eq.s32.totalorder %s28, 3
      %p186 = por %p184, %p185
      %p187 = scmp.ne.s32.totalorder %s178, %s179
      %p188 = scmp.eq.s32.totalorder %s28, 0
      %p189 = por %p187, %p188
      %p190 = scmp.ne.s32.totalorder %s178, %s179
      %p191 = scmp.eq.s32.totalorder %s29, 3
      %p192 = por %p190, %p191
      %p194 = scmp.ne.s32.totalorder %s179, %s193
      %p195 = scmp.eq.s32.totalorder %s29, 0
      %p196 = por %p194, %p195
      %s198 = sadd.s32 %s197, 1
      %p201 = scmp.eq.s32.totalorder %s23, 3
      %p202 = scmp.ne.s32.totalorder %s197, %s199
      %p203 = scmp.eq.s32.totalorder %s23, 0
      %p204 = por %p202, %p203
      %p205 = scmp.ne.s32.totalorder %s197, %s199
      %p206 = scmp.eq.s32.totalorder %s28, 3
      %p207 = por %p205, %p206
      %p208 = scmp.ne.s32.totalorder %s199, %s200
      %p209 = scmp.eq.s32.totalorder %s28, 0
      %p210 = por %p208, %p209
      %p211 = scmp.ne.s32.totalorder %s199, %s200
      %p212 = scmp.eq.s32.totalorder %s29, 3
      %p213 = por %p211, %p212
      %p215 = scmp.ne.s32.totalorder %s200, %s214
      %p216 = scmp.eq.s32.totalorder %s29, 0
      %p217 = por %p215, %p216
      %s219 = sadd.s32 %s218, 1
      %p222 = scmp.eq.s32.totalorder %s23, 3
      %p223 = scmp.ne.s32.totalorder %s218, %s220
      %p224 = scmp.eq.s32.totalorder %s23, 0
      %p225 = por %p223, %p224
      %p226 = scmp.ne.s32.totalorder %s218, %s220
      %p227 = scmp.eq.s32.totalorder %s28, 3
      %p228 = por %p226, %p227
      %p229 = scmp.ne.s32.totalorder %s220, %s221
      %p230 = scmp.eq.s32.totalorder %s28, 0
      %p231 = por %p229, %p230
      %p232 = scmp.ne.s32.totalorder %s220, %s221
      %p233 = scmp.eq.s32.totalorder %s29, 3
      %p234 = por %p232, %p233
      %p236 = scmp.ne.s32.totalorder %s221, %s235
      %p237 = scmp.eq.s32.totalorder %s29, 0
      %p238 = por %p236, %p237
      %s240 = sadd.s32 %s239, 1
      %p243 = scmp.eq.s32.totalorder %s23, 3
      %p244 = scmp.ne.s32.totalorder %s239, %s241
      %p245 = scmp.eq.s32.totalorder %s23, 0
      %p246 = por %p244, %p245
      %p247 = scmp.ne.s32.totalorder %s239, %s241
      %p248 = scmp.eq.s32.totalorder %s28, 3
      %p249 = por %p247, %p248
      %p250 = scmp.ne.s32.totalorder %s241, %s242
      %p251 = scmp.eq.s32.totalorder %s28, 0
      %p252 = por %p250, %p251
      %p253 = scmp.ne.s32.totalorder %s241, %s242
      %p254 = scmp.eq.s32.totalorder %s29, 3
      %p255 = por %p253, %p254
      %p257 = scmp.ne.s32.totalorder %s242, %s256
      %p258 = scmp.eq.s32.totalorder %s29, 0
      %p259 = por %p257, %p258
      %s261 = sadd.s32 %s260, 1
      %p264 = scmp.eq.s32.totalorder %s23, 3
      %p265 = scmp.ne.s32.totalorder %s260, %s262
      %p266 = scmp.eq.s32.totalorder %s23, 0
      %p267 = por %p265, %p266
      %p268 = scmp.ne.s32.totalorder %s260, %s262
      %p269 = scmp.eq.s32.totalorder %s28, 3
      %p270 = por %p268, %p269
      %p271 = scmp.ne.s32.totalorder %s262, %s263
      %p272 = scmp.eq.s32.totalorder %s28, 0
      %p273 = por %p271, %p272
      %p274 = scmp.ne.s32.totalorder %s262, %s263
      %p275 = scmp.eq.s32.totalorder %s29, 3
      %p276 = por %p274, %p275
      %p278 = scmp.ne.s32.totalorder %s263, %s277
      %p279 = scmp.eq.s32.totalorder %s29, 0
      %p280 = por %p278, %p279
      %s282 = sadd.s32 %s281, 1
      %p285 = scmp.eq.s32.totalorder %s23, 3
      %p286 = scmp.ne.s32.totalorder %s281, %s283
      %p287 = scmp.eq.s32.totalorder %s23, 0
      %p288 = por %p286, %p287
      %p289 = scmp.ne.s32.totalorder %s281, %s283
      %p290 = scmp.eq.s32.totalorder %s28, 3
      %p291 = por %p289, %p290
      %p292 = scmp.ne.s32.totalorder %s283, %s284
      %p293 = scmp.eq.s32.totalorder %s28, 0
      %p294 = por %p292, %p293
      %p295 = scmp.ne.s32.totalorder %s283, %s284
      %p296 = scmp.eq.s32.totalorder %s29, 3
      %p297 = por %p295, %p296
      %p299 = scmp.ne.s32.totalorder %s284, %s298
      %p300 = scmp.eq.s32.totalorder %s29, 0
      %p301 = por %p299, %p300
      %s303 = sadd.s32 %s302, 1
      %p306 = scmp.eq.s32.totalorder %s23, 3
      %p307 = scmp.ne.s32.totalorder %s302, %s304
      %p308 = scmp.eq.s32.totalorder %s23, 0
      %p309 = por %p307, %p308
      %p310 = scmp.ne.s32.totalorder %s302, %s304
      %p311 = scmp.eq.s32.totalorder %s28, 3
      %p312 = por %p310, %p311
      %p313 = scmp.ne.s32.totalorder %s304, %s305
      %p314 = scmp.eq.s32.totalorder %s28, 0
      %p315 = por %p313, %p314
      %p316 = scmp.ne.s32.totalorder %s304, %s305
      %p317 = scmp.eq.s32.totalorder %s29, 3
      %p318 = por %p316, %p317
      %p320 = scmp.ne.s32.totalorder %s305, %s319
      %p321 = scmp.eq.s32.totalorder %s29, 0
      %p322 = por %p320, %p321
      %s323 = ssub.s32 %s30, %s42
      %s324 = ssub.s32 %s31, %s38
      %s325 = sor.u32 %s323, %s324
      %p326 = scmp.eq.s32.totalorder %s325, 0
      %s328 = sadd.s32 %s327, 1
      %s329 = scalar_select %p326, %s327, %s328
      %p332 = pneg %p326
      %p333 = scmp.eq.s32.totalorder %s23, 3
      %p334 = por %p332, %p333
      %p335 = scmp.ne.s32.totalorder %s327, %s330
      %p336 = scmp.eq.s32.totalorder %s23, 0
      %p337 = por %p335, %p336
      %p338 = scmp.ne.s32.totalorder %s327, %s330
      %p339 = scmp.eq.s32.totalorder %s28, 3
      %p340 = por %p338, %p339
      %p341 = scmp.ne.s32.totalorder %s330, %s331
      %p342 = scmp.eq.s32.totalorder %s28, 0
      %p343 = por %p341, %p342
      %p344 = scmp.ne.s32.totalorder %s330, %s331
      %p345 = scmp.eq.s32.totalorder %s29, 3
      %p346 = por %p344, %p345
      %p348 = scmp.ne.s32.totalorder %s331, %s347
      %p349 = scmp.eq.s32.totalorder %s29, 0
      %p350 = por %p348, %p349
      %p351 = scmp.le.s32.totalorder 1, %s23
      %p352 = scmp.lt.s32.totalorder %s23, 5
      %p353 = pnand %p351, %p352
      %p354 = pneg %p353
      // Predicated region
      $region9: #{tpu_custom_call.1} parent=5 // pred_check
        _
      $region10: #{tpu_custom_call.1} parent=5 // pred_check_branch
        %356 = sbr.rel (%p353) target = $region12
      $region11: #{tpu_custom_call.1} parent=5 // pred_region
        %s357 = ssub.s32 %s23, 1
        // Predicated region
        $region13: #{tpu_custom_call.1} parent=11 // pred_check
          %p358 = pneg %p84
        $region14: #{tpu_custom_call.1} parent=11 // pred_check_branch
          %360 = sbr.rel (%p358) target = $region16
        $region15: #{tpu_custom_call.1} parent=11 // pred_region
          %362 = vsyncadd [#allocation5], 0
          %s364 = sshll.u32 %s1, 4
          %s365 = int_to_ptr.hbm [resolvable:$true] %s364
          %s366 = sshll.u32 [#allocation4], 4
          %s367 = int_to_ptr.vmem [resolvable:$true] %s366
          %369 = dma.hbm_to_vmem [thread:$0]  %s365, 16, %s367, [#allocation5]
        $region16: #{tpu_custom_call.1} parent=11 // pred_fallthru
          _
        // Predicated region
        $region17: #{tpu_custom_call.1} parent=11 // pred_check
          %p370 = pneg %p105
        $region18: #{tpu_custom_call.1} parent=11 // pred_check_branch
          %372 = sbr.rel (%p370) target = $region20
        $region19: #{tpu_custom_call.1} parent=11 // pred_region
          _
        $region20: #{tpu_custom_call.1} parent=11 // pred_fallthru
          _
        // Predicated region
        $region21: #{tpu_custom_call.1} parent=11 // pred_check
          %p373 = pneg %p126
        $region22: #{tpu_custom_call.1} parent=11 // pred_check_branch
          %375 = sbr.rel (%p373) target = $region24
        $region23: #{tpu_custom_call.1} parent=11 // pred_region
          _
        $region24: #{tpu_custom_call.1} parent=11 // pred_fallthru
          _
        // Predicated region
        $region25: #{tpu_custom_call.1} parent=11 // pred_check
          %p376 = pneg %p147
        $region26: #{tpu_custom_call.1} parent=11 // pred_check_branch
          %378 = sbr.rel (%p376) target = $region28
        $region27: #{tpu_custom_call.1} parent=11 // pred_region
          _
        $region28: #{tpu_custom_call.1} parent=11 // pred_fallthru
          _
        // Predicated region
        $region29: #{tpu_custom_call.1} parent=11 // pred_check
          %p379 = pneg %p168
        $region30: #{tpu_custom_call.1} parent=11 // pred_check_branch
          %381 = sbr.rel (%p379) target = $region32
        $region31: #{tpu_custom_call.1} parent=11 // pred_region
          _
        $region32: #{tpu_custom_call.1} parent=11 // pred_fallthru
          _
        // Predicated region
        $region33: #{tpu_custom_call.1} parent=11 // pred_check
          %p382 = pneg %p189
        $region34: #{tpu_custom_call.1} parent=11 // pred_check_branch
          %384 = sbr.rel (%p382) target = $region36
        $region35: #{tpu_custom_call.1} parent=11 // pred_region
          _
        $region36: #{tpu_custom_call.1} parent=11 // pred_fallthru
          _
        // Predicated region
        $region37: #{tpu_custom_call.1} parent=11 // pred_check
          %p385 = pneg %p210
        $region38: #{tpu_custom_call.1} parent=11 // pred_check_branch
          %387 = sbr.rel (%p385) target = $region40
        $region39: #{tpu_custom_call.1} parent=11 // pred_region
          _
        $region40: #{tpu_custom_call.1} parent=11 // pred_fallthru
          _
        // Predicated region
        $region41: #{tpu_custom_call.1} parent=11 // pred_check
          %p388 = pneg %p231
        $region42: #{tpu_custom_call.1} parent=11 // pred_check_branch
          %390 = sbr.rel (%p388) target = $region44
        $region43: #{tpu_custom_call.1} parent=11 // pred_region
          _
        $region44: #{tpu_custom_call.1} parent=11 // pred_fallthru
          _
        // Predicated region
        $region45: #{tpu_custom_call.1} parent=11 // pred_check
          %p391 = pneg %p252
        $region46: #{tpu_custom_call.1} parent=11 // pred_check_branch
          %393 = sbr.rel (%p391) target = $region48
        $region47: #{tpu_custom_call.1} parent=11 // pred_region
          _
        $region48: #{tpu_custom_call.1} parent=11 // pred_fallthru
          _
        // Predicated region
        $region49: #{tpu_custom_call.1} parent=11 // pred_check
          %p394 = pneg %p273
        $region50: #{tpu_custom_call.1} parent=11 // pred_check_branch
          %396 = sbr.rel (%p394) target = $region52
        $region51: #{tpu_custom_call.1} parent=11 // pred_region
          _
        $region52: #{tpu_custom_call.1} parent=11 // pred_fallthru
          _
        // Predicated region
        $region53: #{tpu_custom_call.1} parent=11 // pred_check
          %p397 = pneg %p294
        $region54: #{tpu_custom_call.1} parent=11 // pred_check_branch
          %399 = sbr.rel (%p397) target = $region56
        $region55: #{tpu_custom_call.1} parent=11 // pred_region
          _
        $region56: #{tpu_custom_call.1} parent=11 // pred_fallthru
          _
        // Predicated region
        $region57: #{tpu_custom_call.1} parent=11 // pred_check
          %p400 = pneg %p315
        $region58: #{tpu_custom_call.1} parent=11 // pred_check_branch
          %402 = sbr.rel (%p400) target = $region60
        $region59: #{tpu_custom_call.1} parent=11 // pred_region
          _
        $region60: #{tpu_custom_call.1} parent=11 // pred_fallthru
          _
      $region12: #{tpu_custom_call.1} parent=5 // pred_fallthru
        _
      %p403 = scmp.lt.s32.totalorder %s23, 4
      // Predicated region
      $region61: #{tpu_custom_call.1} parent=5 // pred_check
        %p404 = pneg %p403
      $region62: #{tpu_custom_call.1} parent=5 // pred_check_branch
        %406 = sbr.rel (%p404) target = $region64
      $region63: #{tpu_custom_call.1} parent=5 // pred_region
        // Predicated region
        $region65: #{tpu_custom_call.1} parent=63 // pred_check
          %p407 = pneg %p57
        $region66: #{tpu_custom_call.1} parent=63 // pred_check_branch
          %409 = sbr.rel (%p407) target = $region68
        $region67: #{tpu_custom_call.1} parent=63 // pred_region
          %p410 = scmp.lt.s32.totalorder %s30, 1
          %s411 = scalar_select %p410, %s30, 1
          %p412 = scmp.lt.s32.totalorder %s31, 1
          %s413 = scalar_select %p412, %s31, 1
          %s414 = smul.addr %s411, 2
          %s415 = sadd.s32 %s413, %s414
          %s416 = smul.addr %s415, 8
          %s417 = scalar_lea.vmem %s0, %s416
        $region68: #{tpu_custom_call.1} parent=63 // pred_fallthru
          _
      $region64: #{tpu_custom_call.1} parent=5 // pred_fallthru
        _
      %p418 = scmp.le.s32.totalorder 1, %s23
      %p419 = scmp.lt.s32.totalorder %s23, 5
      %p420 = pnand %p418, %p419
      %p421 = pneg %p420
      // Predicated region
      $region69: #{tpu_custom_call.1} parent=5 // pred_check
        _
      $region70: #{tpu_custom_call.1} parent=5 // pred_check_branch
        %423 = sbr.rel (%p420) target = $region72
      $region71: #{tpu_custom_call.1} parent=5 // pred_region
        %s424 = ssub.s32 %s23, 1
        // Predicated region
        $region73: #{tpu_custom_call.1} parent=71 // pred_check
          %p425 = pneg %p84
        $region74: #{tpu_custom_call.1} parent=71 // pred_check_branch
          %427 = sbr.rel (%p425) target = $region76
        $region75: #{tpu_custom_call.1} parent=71 // pred_region
          %429 = dma.done [#allocation5], 16
        $region76: #{tpu_custom_call.1} parent=71 // pred_fallthru
          _
        %p430 = scmp.lt.s32.totalorder %s32, 1
        %s431 = scalar_select %p430, %s32, 1
        %p432 = scmp.lt.s32.totalorder %s33, 1
        %s433 = scalar_select %p432, %s33, 1
        %s434 = smul.addr %s431, 2
        %s435 = sadd.s32 %s433, %s434
        %s436 = smul.addr %s435, 8
        %s437 = scalar_lea.vmem %s0, %s436
        %p438 = pneg %p63
        %p439 = pneg %p60
        %p440 = pneg %p84
        %p441 = pneg %p81
        %p442 = pneg %p105
        %p443 = pneg %p102
        %p444 = pneg %p126
        %p445 = pneg %p123
        %p446 = pneg %p147
        %p447 = pneg %p144
        %p448 = pneg %p168
        %p449 = pneg %p165
        %p450 = pneg %p189
        %p451 = pneg %p186
        %p452 = pneg %p210
        %p453 = pneg %p207
        %p454 = pneg %p231
        %p455 = pneg %p228
        %p456 = pneg %p252
        %p457 = pneg %p249
        %p458 = pneg %p273
        %p459 = pneg %p270
        %p460 = pneg %p294
        %p461 = pneg %p291
        %p462 = pneg %p315
        %p463 = pneg %p312
        %p464 = pneg %p343
        %p465 = pneg %p340
        %s466 = sand.u32 %s330, 1
        %s467 = scalar_lea.sflag [#allocation6], %s466
        %s468 = sand.u32 %s330, 1
        %s469 = smul.addr %s468, 8
        %s470 = scalar_lea.vmem [#allocation7], %s469
        %p471 = scmp.lt.s32.totalorder %s32, 1
        %s472 = scalar_select %p471, %s32, 1
        %p473 = scmp.lt.s32.totalorder %s33, 1
        %s474 = scalar_select %p473, %s33, 1
        %s475 = smul.addr %s472, 2
        %s476 = sadd.s32 %s474, %s475
        %s477 = smul.addr %s476, 8
        %s478 = scalar_lea.vmem %s0, %s477
        %v480 = vld [vmem:[%s478] sm:$0xff]
        %v481 = vld [vmem:[#allocation4] sm:$0x1]
        %v482 = vld [vmem:[%s2] sm:$0x1]
        %vm483 = vcmask 261120
        %v484 = vsel %vm483, %v480, 0.0
        %485 = vadd.xlane.f32.xlu0 %v484
        %v486 = vpop.xlane.xlu0 %485
        %v487 = vrcp.pop 32.0
        %v488 = vmul.f32 32.0, %v487
        %v489 = vsub.f32 1.0, %v488
        %v490 = vmul.f32 %v487, %v489
        %v491 = vadd.f32 %v487, %v490
        %vm492 = vweird.f32 %v487
        %v493 = vsel %vm492, %v487, %v491
        %v494 = vmul.f32 %v486, %v493
        %v495 = vsub.f32 %v480, %v494
        %v496 = vmul.f32 %v495, %v495
        %v497 = vsel %vm483, %v496, 0.0
        %498 = vadd.xlane.f32.xlu0 %v497
        %v499 = vpop.xlane.xlu0 %498
        %v500 = vmul.f32 %v499, %v493
        %v501 = vadd.f32 %v500, 1e-05
        %v502 = vrsqrt.pop %v501
        %v503 = vmul.f32 %v502, %v501
        %v504 = vmul.f32 %v503, %v502
        %v505 = vmul.f32 0.5, %v504
        %v506 = vsub.f32 1.5, %v505
        %v507 = vmul.f32 %v502, %v506
        %v508 = vmul.f32 %v501, %v507
        %vm509 = vcmp.eq.f32.partialorder %v501, inf
        %v510 = vsel %vm509, %v501, %v508
        %vm511 = vcmp.eq.f32.partialorder %v501, 0.0
        %v512 = vand.u32 %v501, 2147483648
        %v513 = vsel %vm511, %v512, %v510
        %v514 = vrcp.pop %v513
        %v515 = vmul.f32 %v513, %v514
        %v516 = vsub.f32 1.0, %v515
        %v517 = vmul.f32 %v514, %v516
        %v518 = vadd.f32 %v514, %v517
        %vm519 = vweird.f32 %v513
        %vm520 = vweird.f32 %v514
        %vm521 = vmor %vm519, %vm520
        %v522 = vsel %vm521, %v514, %v518
        %v523 = vand.u32 2147483647, %v513
        %vm524 = vcmp.eq.f32.partialorder %v523, 8.507059e+37
        %v525 = vand.u32 %v513, 2147483648
        %v526 = vor.u32 1.1754944e-38, %v525
        %v527 = vsel %vm524, %v526, %v522
        %v528 = vmul.f32 %v495, %v527
        %v530 = vperm.slane %v481, 0
        %v532 = vmul.f32 %v528, %v530
        %v534 = vperm.slane %v482, 0
        %v536 = vadd.f32 %v532, %v534
        %v537 = vpack.c.bf16 %v536, %v536
        %v538 = vld [vmem:[%s3] sm:$0xf]
        %v539 = vld [vmem:[%s3 + $0x4] sm:$0xf]
        %v540 = vld [vmem:[%s3 + $0x8] sm:$0xf]
        %v541 = vld [vmem:[%s3 + $0xc] sm:$0xf]
        %v542 = vld [vmem:[%s4] sm:$0x1]
        %v544 = vperm.slane %v542, 0
        %v550 = vunpack.c.l.b16 %v538
        %v551 = vunpack.c.l.b16 %v539
        %v552 = vunpack.c.l.b16 %v540
        %v553 = vunpack.c.l.b16 %v541
        %v554 = vpack.c.b16 %v551, %v550
        %v555 = vpack.c.b16 %v553, %v552
        %v559 = vsel %vm483, %v537, 0
        %561 = vmatpush.bf16.msra.mxu0 0
        %562 = vmatpush.bf16.msra.mxu0 0
        %563 = vmatpush.bf16.msra.mxu0 0
        %564 = vmatpush.bf16.msra.mxu0 0
        %565 = vmatpush.bf16.msra.mxu0 0
        %566 = vmatpush.bf16.msra.mxu0 0
        %567 = vmatpush.bf16.msra.mxu0 %v555
        %568 = vmatpush.bf16.msra.mxu0 %v554
        %569 = vmatmul.bf16.gmra.mxu0 %v559
        %v570 = vpop.f32.mrf.mxu0
        %v571 = vadd.f32 %v544, %v570
        %v572 = vpop.f32.mrf.mxu0
        %573 = vdwg.mxu0
        %v574 = vmul.f32 %v571, 0.35355338
        %v575 = vpack.c.bf16 %v571, %v571
        %s576 = smul.u32 %s33, 8
        %578 = vrot.lane.b32.xlu0 %v575, 96
        %v579 = vpop.permute.xlu0 %578
        %s581 = sshra.s32 %s576, 3
        %s582 = sand.u32 %s576, 7
        %s583 = smul.addr %s581, 4
        %s584 = scalar_lea.vmem [#allocation2], %s583
        %vm585 = vcmask 257024
        %586 = vst.msk [vmem:[%s584] sm:$0xf] %vm585, %v579
        %587 = vrot.lane.b32.xlu0 %v575, 64
        %v588 = vpop.permute.xlu0 %587
        %s590 = smul.addr %s581, 4
        %s591 = scalar_lea.vmem [#allocation3], %s590
        %592 = vst.msk [vmem:[%s591] sm:$0xf] %vm585, %v588
        %v593 = vlaneseq
        %v594 = vshrl.u32 %v593, 7
        %v595 = vlaneseq
        %v596 = vand.u32 %v595, 127
        %vm597 = vcmp.gt.s32.totalorder %v596, %v594
        %v598 = vpack.c.bf16 %v574, %v574
        // While loop
        $region77: #{tpu_custom_call.1} parent=71 // loop_pre_header
          _
        $region78: #{tpu_custom_call.1} parent=71 // loop_header
          %s600 = sphi 0, %s602
          %p601 = scmp.ge.s32.totalorder %s600, %s33
          %v605 = vphi -1e+30, %v640
          %v606 = vphi 0.0, %v651
          %v607 = vphi 0.0, %v674
        $region79: #{tpu_custom_call.1} parent=71 // loop_header_branch
          %604 = sbr.rel (%p601) target = $region83
        $region80: #{tpu_custom_call.1} parent=71 // loop_body
          %s608 = smul.u32 %s600, 8
          %s609 = sshra.s32 %s608, 3
          %s610 = sand.u32 %s608, 7
          %s611 = smul.addr %s609, 4
          %s612 = scalar_lea.vmem [#allocation2], %s611
          %v613 = vld [vmem:[%s612] sm:$0xf]
          %s614 = smul.addr %s609, 4
          %s615 = scalar_lea.vmem [#allocation3], %s614
          %v616 = vld [vmem:[%s615] sm:$0xf]
          %vm617 = vcmask 64512
          %v619 = vsel %vm617, %v598, 0
          %v622 = vsel %vm617, %v613, 0
          %624 = vmatpush.bf16.xpose.msra.mxu0 0
          %625 = vmatpush.bf16.xpose.msra.mxu0 0
          %626 = vmatpush.bf16.xpose.msra.mxu0 0
          %627 = vmatpush.bf16.xpose.msra.mxu0 0
          %628 = vmatpush.bf16.xpose.msra.mxu0 0
          %629 = vmatpush.bf16.xpose.msra.mxu0 0
          %630 = vmatpush.bf16.xpose.msra.mxu0 0
          %631 = vmatpush.bf16.xpose.msra.mxu0 %v622
          %632 = vmatmul.bf16.gmra.mxu0 %v619
          %v633 = vpop.f32.mrf.mxu0
          %v634 = vadd.f32 0.0, %v633
          %v635 = vpop.f32.mrf.mxu0
          %636 = vdwg.mxu0
          %v637 = vsel %vm617, %v634, -inf
          %638 = vmax.xlane.f32.xlu0 %v637
          %v639 = vpop.xlane.xlu0 %638
          %v640 = vmax.f32 %v605, %v639
          %v641 = vsub.f32 %v605, %v640
          %v642 = vmul.f32 %v641, 1.442695
          %v643 = vpow.pop %v642
          %v644 = vsub.f32 %v634, %v640
          %v645 = vmul.f32 %v644, 1.442695
          %v646 = vpow.pop %v645
          %v647 = vmul.f32 %v643, %v606
          %v648 = vsel %vm617, %v646, 0.0
          %649 = vadd.xlane.f32.xlu0 %v648
          %v650 = vpop.xlane.xlu0 %649
          %v651 = vadd.f32 %v647, %v650
          %v652 = vmul.f32 %v643, %v607
          %v653 = vpack.c.bf16 %v646, %v646
          %v655 = vsel %vm617, %v653, 0
          %vm657 = vcmask 1043456
          %v659 = vsel %vm657, %v616, 0
          %661 = vmatpush.bf16.msra.mxu0 0
          %662 = vmatpush.bf16.msra.mxu0 0
          %663 = vmatpush.bf16.msra.mxu0 0
          %664 = vmatpush.bf16.msra.mxu0 0
          %665 = vmatpush.bf16.msra.mxu0 0
          %666 = vmatpush.bf16.msra.mxu0 0
          %667 = vmatpush.bf16.msra.mxu0 0
          %668 = vmatpush.bf16.msra.mxu0 %v659
          %669 = vmatmul.bf16.gmra.mxu0 %v655
          %v670 = vpop.f32.mrf.mxu0
          %v671 = vadd.f32 0.0, %v670
          %v672 = vpop.f32.mrf.mxu0
          %673 = vdwg.mxu0
          %v674 = vadd.f32 %v652, %v671
        $region81: #{tpu_custom_call.1} parent=71 // loop_footer
          %s602 = sadd.s32 %s600, 1
        $region82: #{tpu_custom_call.1} parent=71 // loop_footer_branch
          %599 = sbr.rel target = $region78
        $region83: #{tpu_custom_call.1} parent=71 // loop_exit
          _
        %v675 = vunpack.c.l.b16 %v575
        %v676 = vpack.c.b16 %v675, %v675
        %677 = vrot.lane.b32.xlu0 %v676, 96
        %v678 = vpop.permute.xlu0 %677
        %vm679 = vcmask 64512
        %v681 = vsel %vm679, %v598, 0
        %v684 = vsel %vm679, %v678, 0
        %686 = vmatpush.bf16.xpose.msra.mxu0 0
        %687 = vmatpush.bf16.xpose.msra.mxu0 0
        %688 = vmatpush.bf16.xpose.msra.mxu0 0
        %689 = vmatpush.bf16.xpose.msra.mxu0 0
        %690 = vmatpush.bf16.xpose.msra.mxu0 0
        %691 = vmatpush.bf16.xpose.msra.mxu0 0
        %692 = vmatpush.bf16.xpose.msra.mxu0 0
        %693 = vmatpush.bf16.xpose.msra.mxu0 %v684
        %694 = vmatmul.bf16.gmra.mxu0 %v681
        %v695 = vpop.f32.mrf.mxu0
        %v696 = vadd.f32 0.0, %v695
        %v697 = vpop.f32.mrf.mxu0
        %698 = vdwg.mxu0
        %v699 = vsel %vm597, -1e+30, %v696
        %v700 = vsel %vm679, %v699, -inf
        %701 = vmax.xlane.f32.xlu0 %v700
        %v702 = vpop.xlane.xlu0 %701
        %v703 = vmax.f32 %v605, %v702
        %v704 = vsub.f32 %v605, %v703
        %v705 = vmul.f32 %v704, 1.442695
        %v706 = vpow.pop %v705
        %v707 = vsub.f32 %v699, %v703
        %v708 = vmul.f32 %v707, 1.442695
        %v709 = vpow.pop %v708
        %v710 = vmul.f32 %v706, %v606
        %v711 = vsel %vm679, %v709, 0.0
        %712 = vadd.xlane.f32.xlu0 %v711
        %v713 = vpop.xlane.xlu0 %712
        %v714 = vadd.f32 %v710, %v713
        %v715 = vmul.f32 %v706, %v607
        %v716 = vpack.c.bf16 %v709, %v709
        %717 = vrot.lane.b32.xlu0 %v676, 64
        %v718 = vpop.permute.xlu0 %717
        %v720 = vsel %vm679, %v716, 0
        %vm722 = vcmask 1043456
        %v724 = vsel %vm722, %v718, 0
        %726 = vmatpush.bf16.msra.mxu0 0
        %727 = vmatpush.bf16.msra.mxu0 0
        %728 = vmatpush.bf16.msra.mxu0 0
        %729 = vmatpush.bf16.msra.mxu0 0
        %730 = vmatpush.bf16.msra.mxu0 0
        %731 = vmatpush.bf16.msra.mxu0 0
        %732 = vmatpush.bf16.msra.mxu0 0
        %733 = vmatpush.bf16.msra.mxu0 %v724
        %734 = vmatmul.bf16.gmra.mxu0 %v720
        %v735 = vpop.f32.mrf.mxu0
        %v736 = vadd.f32 0.0, %v735
        %v737 = vpop.f32.mrf.mxu0
        %738 = vdwg.mxu0
        %v739 = vadd.f32 %v715, %v736
        %v740 = vrcp.pop %v714
        %v741 = vmul.f32 %v739, %v740
        %v742 = vpack.c.bf16 %v741, %v741
        // While loop
        $region84: #{tpu_custom_call.1} parent=71 // loop_pre_header
          _
        $region85: #{tpu_custom_call.1} parent=71 // loop_header
          %s744 = sphi 0, %s746
          %p745 = scmp.ge.s32.totalorder %s744, %s33
          %v749 = vphi -1e+30, %v791
          %v750 = vphi 0.0, %v802
          %v751 = vphi 0.0, %v829
        $region86: #{tpu_custom_call.1} parent=71 // loop_header_branch
          %748 = sbr.rel (%p745) target = $region90
        $region87: #{tpu_custom_call.1} parent=71 // loop_body
          %s752 = smul.u32 %s744, 8
          %s753 = sshra.s32 %s752, 3
          %s754 = sand.u32 %s752, 7
          %s755 = smul.addr %s753, 4
          %s756 = scalar_lea.vmem [#allocation2], %s755
          %v757 = vld [vmem:[%s756] sm:$0xf]
          %s758 = smul.addr %s753, 4
          %s759 = scalar_lea.vmem [#allocation3], %s758
          %v760 = vld [vmem:[%s759] sm:$0xf]
          %762 = vrot.lane.b32.xlu0 %v598, 120
          %v763 = vpop.permute.xlu0 %762
          %v765 = vunpack.c.l.b16 %v757
          %v766 = vpack.c.b16 %v765, %v765
          %767 = vrot.lane.b32.xlu0 %v766, 120
          %v768 = vpop.permute.xlu0 %767
          %v770 = vsel %vm679, %v763, 0
          %v773 = vsel %vm679, %v768, 0
          %775 = vmatpush.bf16.xpose.msra.mxu0 0
          %776 = vmatpush.bf16.xpose.msra.mxu0 0
          %777 = vmatpush.bf16.xpose.msra.mxu0 0
          %778 = vmatpush.bf16.xpose.msra.mxu0 0
          %779 = vmatpush.bf16.xpose.msra.mxu0 0
          %780 = vmatpush.bf16.xpose.msra.mxu0 0
          %781 = vmatpush.bf16.xpose.msra.mxu0 0
          %782 = vmatpush.bf16.xpose.msra.mxu0 %v773
          %783 = vmatmul.bf16.gmra.mxu0 %v770
          %v784 = vpop.f32.mrf.mxu0
          %v785 = vadd.f32 0.0, %v784
          %v786 = vpop.f32.mrf.mxu0
          %787 = vdwg.mxu0
          %v788 = vsel %vm679, %v785, -inf
          %789 = vmax.xlane.f32.xlu0 %v788
          %v790 = vpop.xlane.xlu0 %789
          %v791 = vmax.f32 %v749, %v790
          %v792 = vsub.f32 %v749, %v791
          %v793 = vmul.f32 %v792, 1.442695
          %v794 = vpow.pop %v793
          %v795 = vsub.f32 %v785, %v791
          %v796 = vmul.f32 %v795, 1.442695
          %v797 = vpow.pop %v796
          %v798 = vmul.f32 %v794, %v750
          %v799 = vsel %vm679, %v797, 0.0
          %800 = vadd.xlane.f32.xlu0 %v799
          %v801 = vpop.xlane.xlu0 %800
          %v802 = vadd.f32 %v798, %v801
          %v803 = vmul.f32 %v794, %v751
          %v804 = vpack.c.bf16 %v797, %v797
          %v806 = vunpack.c.l.b16 %v760
          %v807 = vpack.c.b16 %v806, %v806
          %808 = vrot.lane.b32.xlu0 %v807, 120
          %v809 = vpop.permute.xlu0 %808
          %v811 = vsel %vm679, %v804, 0
          %v814 = vsel %vm722, %v809, 0
          %816 = vmatpush.bf16.msra.mxu0 0
          %817 = vmatpush.bf16.msra.mxu0 0
          %818 = vmatpush.bf16.msra.mxu0 0
          %819 = vmatpush.bf16.msra.mxu0 0
          %820 = vmatpush.bf16.msra.mxu0 0
          %821 = vmatpush.bf16.msra.mxu0 0
          %822 = vmatpush.bf16.msra.mxu0 0
          %823 = vmatpush.bf16.msra.mxu0 %v814
          %824 = vmatmul.bf16.gmra.mxu0 %v811
          %v825 = vpop.f32.mrf.mxu0
          %v826 = vadd.f32 0.0, %v825
          %v827 = vpop.f32.mrf.mxu0
          %828 = vdwg.mxu0
          %v829 = vadd.f32 %v803, %v826
        $region88: #{tpu_custom_call.1} parent=71 // loop_footer
          %s746 = sadd.s32 %s744, 1
        $region89: #{tpu_custom_call.1} parent=71 // loop_footer_branch
          %743 = sbr.rel target = $region85
        $region90: #{tpu_custom_call.1} parent=71 // loop_exit
          _
        %831 = vrot.lane.b32.xlu0 %v598, 120
        %v832 = vpop.permute.xlu0 %831
        %833 = vrot.lane.b32.xlu0 %v676, 88
        %v834 = vpop.permute.xlu0 %833
        %v836 = vsel %vm679, %v832, 0
        %v839 = vsel %vm679, %v834, 0
        %841 = vmatpush.bf16.xpose.msra.mxu0 0
        %842 = vmatpush.bf16.xpose.msra.mxu0 0
        %843 = vmatpush.bf16.xpose.msra.mxu0 0
        %844 = vmatpush.bf16.xpose.msra.mxu0 0
        %845 = vmatpush.bf16.xpose.msra.mxu0 0
        %846 = vmatpush.bf16.xpose.msra.mxu0 0
        %847 = vmatpush.bf16.xpose.msra.mxu0 0
        %848 = vmatpush.bf16.xpose.msra.mxu0 %v839
        %849 = vmatmul.bf16.gmra.mxu0 %v836
        %v850 = vpop.f32.mrf.mxu0
        %v851 = vadd.f32 0.0, %v850
        %v852 = vpop.f32.mrf.mxu0
        %853 = vdwg.mxu0
        %v854 = vsel %vm597, -1e+30, %v851
        %v855 = vsel %vm679, %v854, -inf
        %856 = vmax.xlane.f32.xlu0 %v855
        %v857 = vpop.xlane.xlu0 %856
        %v858 = vmax.f32 %v749, %v857
        %v859 = vsub.f32 %v749, %v858
        %v860 = vmul.f32 %v859, 1.442695
        %v861 = vpow.pop %v860
        %v862 = vsub.f32 %v854, %v858
        %v863 = vmul.f32 %v862, 1.442695
        %v864 = vpow.pop %v863
        %v865 = vmul.f32 %v861, %v750
        %v866 = vsel %vm679, %v864, 0.0
        %867 = vadd.xlane.f32.xlu0 %v866
        %v868 = vpop.xlane.xlu0 %867
        %v869 = vadd.f32 %v865, %v868
        %v870 = vmul.f32 %v861, %v751
        %v871 = vpack.c.bf16 %v864, %v864
        %872 = vrot.lane.b32.xlu0 %v676, 56
        %v873 = vpop.permute.xlu0 %872
        %v875 = vsel %vm679, %v871, 0
        %v878 = vsel %vm722, %v873, 0
        %880 = vmatpush.bf16.msra.mxu0 0
        %881 = vmatpush.bf16.msra.mxu0 0
        %882 = vmatpush.bf16.msra.mxu0 0
        %883 = vmatpush.bf16.msra.mxu0 0
        %884 = vmatpush.bf16.msra.mxu0 0
        %885 = vmatpush.bf16.msra.mxu0 0
        %886 = vmatpush.bf16.msra.mxu0 0
        %887 = vmatpush.bf16.msra.mxu0 %v878
        %888 = vmatmul.bf16.gmra.mxu0 %v875
        %v889 = vpop.f32.mrf.mxu0
        %v890 = vadd.f32 0.0, %v889
        %v891 = vpop.f32.mrf.mxu0
        %892 = vdwg.mxu0
        %v893 = vadd.f32 %v870, %v890
        %v894 = vrcp.pop %v869
        %v895 = vmul.f32 %v893, %v894
        %v896 = vpack.c.bf16 %v895, %v895
        // While loop
        $region91: #{tpu_custom_call.1} parent=71 // loop_pre_header
          _
        $region92: #{tpu_custom_call.1} parent=71 // loop_header
          %s898 = sphi 0, %s900
          %p899 = scmp.ge.s32.totalorder %s898, %s33
          %v903 = vphi -1e+30, %v944
          %v904 = vphi 0.0, %v955
          %v905 = vphi 0.0, %v982
        $region93: #{tpu_custom_call.1} parent=71 // loop_header_branch
          %902 = sbr.rel (%p899) target = $region97
        $region94: #{tpu_custom_call.1} parent=71 // loop_body
          %s906 = smul.u32 %s898, 8
          %s907 = sshra.s32 %s906, 3
          %s908 = sand.u32 %s906, 7
          %s909 = smul.addr %s907, 4
          %s910 = scalar_lea.vmem [#allocation2], %s909
          %v911 = vld [vmem:[%s910] sm:$0xf]
          %s912 = smul.addr %s907, 4
          %s913 = scalar_lea.vmem [#allocation3], %s912
          %v914 = vld [vmem:[%s913] sm:$0xf]
          %915 = vrot.lane.b32.xlu0 %v598, 112
          %v916 = vpop.permute.xlu0 %915
          %v918 = vunpack.c.l.b16 %v911
          %v919 = vpack.c.b16 %v918, %v918
          %920 = vrot.lane.b32.xlu0 %v919, 112
          %v921 = vpop.permute.xlu0 %920
          %v923 = vsel %vm679, %v916, 0
          %v926 = vsel %vm679, %v921, 0
          %928 = vmatpush.bf16.xpose.msra.mxu0 0
          %929 = vmatpush.bf16.xpose.msra.mxu0 0
          %930 = vmatpush.bf16.xpose.msra.mxu0 0
          %931 = vmatpush.bf16.xpose.msra.mxu0 0
          %932 = vmatpush.bf16.xpose.msra.mxu0 0
          %933 = vmatpush.bf16.xpose.msra.mxu0 0
          %934 = vmatpush.bf16.xpose.msra.mxu0 0
          %935 = vmatpush.bf16.xpose.msra.mxu0 %v926
          %936 = vmatmul.bf16.gmra.mxu0 %v923
          %v937 = vpop.f32.mrf.mxu0
          %v938 = vadd.f32 0.0, %v937
          %v939 = vpop.f32.mrf.mxu0
          %940 = vdwg.mxu0
          %v941 = vsel %vm679, %v938, -inf
          %942 = vmax.xlane.f32.xlu0 %v941
          %v943 = vpop.xlane.xlu0 %942
          %v944 = vmax.f32 %v903, %v943
          %v945 = vsub.f32 %v903, %v944
          %v946 = vmul.f32 %v945, 1.442695
          %v947 = vpow.pop %v946
          %v948 = vsub.f32 %v938, %v944
          %v949 = vmul.f32 %v948, 1.442695
          %v950 = vpow.pop %v949
          %v951 = vmul.f32 %v947, %v904
          %v952 = vsel %vm679, %v950, 0.0
          %953 = vadd.xlane.f32.xlu0 %v952
          %v954 = vpop.xlane.xlu0 %953
          %v955 = vadd.f32 %v951, %v954
          %v956 = vmul.f32 %v947, %v905
          %v957 = vpack.c.bf16 %v950, %v950
          %v959 = vunpack.c.l.b16 %v914
          %v960 = vpack.c.b16 %v959, %v959
          %961 = vrot.lane.b32.xlu0 %v960, 112
          %v962 = vpop.permute.xlu0 %961
          %v964 = vsel %vm679, %v957, 0
          %v967 = vsel %vm722, %v962, 0
          %969 = vmatpush.bf16.msra.mxu0 0
          %970 = vmatpush.bf16.msra.mxu0 0
          %971 = vmatpush.bf16.msra.mxu0 0
          %972 = vmatpush.bf16.msra.mxu0 0
          %973 = vmatpush.bf16.msra.mxu0 0
          %974 = vmatpush.bf16.msra.mxu0 0
          %975 = vmatpush.bf16.msra.mxu0 0
          %976 = vmatpush.bf16.msra.mxu0 %v967
          %977 = vmatmul.bf16.gmra.mxu0 %v964
          %v978 = vpop.f32.mrf.mxu0
          %v979 = vadd.f32 0.0, %v978
          %v980 = vpop.f32.mrf.mxu0
          %981 = vdwg.mxu0
          %v982 = vadd.f32 %v956, %v979
        $region95: #{tpu_custom_call.1} parent=71 // loop_footer
          %s900 = sadd.s32 %s898, 1
        $region96: #{tpu_custom_call.1} parent=71 // loop_footer_branch
          %897 = sbr.rel target = $region92
        $region97: #{tpu_custom_call.1} parent=71 // loop_exit
          _
        %983 = vrot.lane.b32.xlu0 %v598, 112
        %v984 = vpop.permute.xlu0 %983
        %985 = vrot.lane.b32.xlu0 %v676, 80
        %v986 = vpop.permute.xlu0 %985
        %v988 = vsel %vm679, %v984, 0
        %v991 = vsel %vm679, %v986, 0
        %993 = vmatpush.bf16.xpose.msra.mxu0 0
        %994 = vmatpush.bf16.xpose.msra.mxu0 0
        %995 = vmatpush.bf16.xpose.msra.mxu0 0
        %996 = vmatpush.bf16.xpose.msra.mxu0 0
        %997 = vmatpush.bf16.xpose.msra.mxu0 0
        %998 = vmatpush.bf16.xpose.msra.mxu0 0
        %999 = vmatpush.bf16.xpose.msra.mxu0 0
        %1000 = vmatpush.bf16.xpose.msra.mxu0 %v991
        %1001 = vmatmul.bf16.gmra.mxu0 %v988
        %v1002 = vpop.f32.mrf.mxu0
        %v1003 = vadd.f32 0.0, %v1002
        %v1004 = vpop.f32.mrf.mxu0
        %1005 = vdwg.mxu0
        %v1006 = vsel %vm597, -1e+30, %v1003
        %v1007 = vsel %vm679, %v1006, -inf
        %1008 = vmax.xlane.f32.xlu0 %v1007
        %v1009 = vpop.xlane.xlu0 %1008
        %v1010 = vmax.f32 %v903, %v1009
        %v1011 = vsub.f32 %v903, %v1010
        %v1012 = vmul.f32 %v1011, 1.442695
        %v1013 = vpow.pop %v1012
        %v1014 = vsub.f32 %v1006, %v1010
        %v1015 = vmul.f32 %v1014, 1.442695
        %v1016 = vpow.pop %v1015
        %v1017 = vmul.f32 %v1013, %v904
        %v1018 = vsel %vm679, %v1016, 0.0
        %1019 = vadd.xlane.f32.xlu0 %v1018
        %v1020 = vpop.xlane.xlu0 %1019
        %v1021 = vadd.f32 %v1017, %v1020
        %v1022 = vmul.f32 %v1013, %v905
        %v1023 = vpack.c.bf16 %v1016, %v1016
        %1024 = vrot.lane.b32.xlu0 %v676, 48
        %v1025 = vpop.permute.xlu0 %1024
        %v1027 = vsel %vm679, %v1023, 0
        %v1030 = vsel %vm722, %v1025, 0
        %1032 = vmatpush.bf16.msra.mxu0 0
        %1033 = vmatpush.bf16.msra.mxu0 0
        %1034 = vmatpush.bf16.msra.mxu0 0
        %1035 = vmatpush.bf16.msra.mxu0 0
        %1036 = vmatpush.bf16.msra.mxu0 0
        %1037 = vmatpush.bf16.msra.mxu0 0
        %1038 = vmatpush.bf16.msra.mxu0 0
        %1039 = vmatpush.bf16.msra.mxu0 %v1030
        %1040 = vmatmul.bf16.gmra.mxu0 %v1027
        %v1041 = vpop.f32.mrf.mxu0
        %v1042 = vadd.f32 0.0, %v1041
        %v1043 = vpop.f32.mrf.mxu0
        %1044 = vdwg.mxu0
        %v1045 = vadd.f32 %v1022, %v1042
        %v1046 = vrcp.pop %v1021
        %v1047 = vmul.f32 %v1045, %v1046
        %v1048 = vpack.c.bf16 %v1047, %v1047
        // While loop
        $region98: #{tpu_custom_call.1} parent=71 // loop_pre_header
          _
        $region99: #{tpu_custom_call.1} parent=71 // loop_header
          %s1050 = sphi 0, %s1052
          %p1051 = scmp.ge.s32.totalorder %s1050, %s33
          %v1055 = vphi -1e+30, %v1096
          %v1056 = vphi 0.0, %v1107
          %v1057 = vphi 0.0, %v1134
        $region100: #{tpu_custom_call.1} parent=71 // loop_header_branch
          %1054 = sbr.rel (%p1051) target = $region104
        $region101: #{tpu_custom_call.1} parent=71 // loop_body
          %s1058 = smul.u32 %s1050, 8
          %s1059 = sshra.s32 %s1058, 3
          %s1060 = sand.u32 %s1058, 7
          %s1061 = smul.addr %s1059, 4
          %s1062 = scalar_lea.vmem [#allocation2], %s1061
          %v1063 = vld [vmem:[%s1062] sm:$0xf]
          %s1064 = smul.addr %s1059, 4
          %s1065 = scalar_lea.vmem [#allocation3], %s1064
          %v1066 = vld [vmem:[%s1065] sm:$0xf]
          %1067 = vrot.lane.b32.xlu0 %v598, 104
          %v1068 = vpop.permute.xlu0 %1067
          %v1070 = vunpack.c.l.b16 %v1063
          %v1071 = vpack.c.b16 %v1070, %v1070
          %1072 = vrot.lane.b32.xlu0 %v1071, 104
          %v1073 = vpop.permute.xlu0 %1072
          %v1075 = vsel %vm679, %v1068, 0
          %v1078 = vsel %vm679, %v1073, 0
          %1080 = vmatpush.bf16.xpose.msra.mxu0 0
          %1081 = vmatpush.bf16.xpose.msra.mxu0 0
          %1082 = vmatpush.bf16.xpose.msra.mxu0 0
          %1083 = vmatpush.bf16.xpose.msra.mxu0 0
          %1084 = vmatpush.bf16.xpose.msra.mxu0 0
          %1085 = vmatpush.bf16.xpose.msra.mxu0 0
          %1086 = vmatpush.bf16.xpose.msra.mxu0 0
          %1087 = vmatpush.bf16.xpose.msra.mxu0 %v1078
          %1088 = vmatmul.bf16.gmra.mxu0 %v1075
          %v1089 = vpop.f32.mrf.mxu0
          %v1090 = vadd.f32 0.0, %v1089
          %v1091 = vpop.f32.mrf.mxu0
          %1092 = vdwg.mxu0
          %v1093 = vsel %vm679, %v1090, -inf
          %1094 = vmax.xlane.f32.xlu0 %v1093
          %v1095 = vpop.xlane.xlu0 %1094
          %v1096 = vmax.f32 %v1055, %v1095
          %v1097 = vsub.f32 %v1055, %v1096
          %v1098 = vmul.f32 %v1097, 1.442695
          %v1099 = vpow.pop %v1098
          %v1100 = vsub.f32 %v1090, %v1096
          %v1101 = vmul.f32 %v1100, 1.442695
          %v1102 = vpow.pop %v1101
          %v1103 = vmul.f32 %v1099, %v1056
          %v1104 = vsel %vm679, %v1102, 0.0
          %1105 = vadd.xlane.f32.xlu0 %v1104
          %v1106 = vpop.xlane.xlu0 %1105
          %v1107 = vadd.f32 %v1103, %v1106
          %v1108 = vmul.f32 %v1099, %v1057
          %v1109 = vpack.c.bf16 %v1102, %v1102
          %v1111 = vunpack.c.l.b16 %v1066
          %v1112 = vpack.c.b16 %v1111, %v1111
          %1113 = vrot.lane.b32.xlu0 %v1112, 104
          %v1114 = vpop.permute.xlu0 %1113
          %v1116 = vsel %vm679, %v1109, 0
          %v1119 = vsel %vm722, %v1114, 0
          %1121 = vmatpush.bf16.msra.mxu0 0
          %1122 = vmatpush.bf16.msra.mxu0 0
          %1123 = vmatpush.bf16.msra.mxu0 0
          %1124 = vmatpush.bf16.msra.mxu0 0
          %1125 = vmatpush.bf16.msra.mxu0 0
          %1126 = vmatpush.bf16.msra.mxu0 0
          %1127 = vmatpush.bf16.msra.mxu0 0
          %1128 = vmatpush.bf16.msra.mxu0 %v1119
          %1129 = vmatmul.bf16.gmra.mxu0 %v1116
          %v1130 = vpop.f32.mrf.mxu0
          %v1131 = vadd.f32 0.0, %v1130
          %v1132 = vpop.f32.mrf.mxu0
          %1133 = vdwg.mxu0
          %v1134 = vadd.f32 %v1108, %v1131
        $region102: #{tpu_custom_call.1} parent=71 // loop_footer
          %s1052 = sadd.s32 %s1050, 1
        $region103: #{tpu_custom_call.1} parent=71 // loop_footer_branch
          %1049 = sbr.rel target = $region99
        $region104: #{tpu_custom_call.1} parent=71 // loop_exit
          _
        %1135 = vrot.lane.b32.xlu0 %v598, 104
        %v1136 = vpop.permute.xlu0 %1135
        %1137 = vrot.lane.b32.xlu0 %v676, 72
        %v1138 = vpop.permute.xlu0 %1137
        %v1140 = vsel %vm679, %v1136, 0
        %v1143 = vsel %vm679, %v1138, 0
        %1145 = vmatpush.bf16.xpose.msra.mxu0 0
        %1146 = vmatpush.bf16.xpose.msra.mxu0 0
        %1147 = vmatpush.bf16.xpose.msra.mxu0 0
        %1148 = vmatpush.bf16.xpose.msra.mxu0 0
        %1149 = vmatpush.bf16.xpose.msra.mxu0 0
        %1150 = vmatpush.bf16.xpose.msra.mxu0 0
        %1151 = vmatpush.bf16.xpose.msra.mxu0 0
        %1152 = vmatpush.bf16.xpose.msra.mxu0 %v1143
        %1153 = vmatmul.bf16.gmra.mxu0 %v1140
        %v1154 = vpop.f32.mrf.mxu0
        %v1155 = vadd.f32 0.0, %v1154
        %v1156 = vpop.f32.mrf.mxu0
        %1157 = vdwg.mxu0
        %v1158 = vsel %vm597, -1e+30, %v1155
        %v1159 = vsel %vm679, %v1158, -inf
        %1160 = vmax.xlane.f32.xlu0 %v1159
        %v1161 = vpop.xlane.xlu0 %1160
        %v1162 = vmax.f32 %v1055, %v1161
        %v1163 = vsub.f32 %v1055, %v1162
        %v1164 = vmul.f32 %v1163, 1.442695
        %v1165 = vpow.pop %v1164
        %v1166 = vsub.f32 %v1158, %v1162
        %v1167 = vmul.f32 %v1166, 1.442695
        %v1168 = vpow.pop %v1167
        %v1169 = vmul.f32 %v1165, %v1056
        %v1170 = vsel %vm679, %v1168, 0.0
        %1171 = vadd.xlane.f32.xlu0 %v1170
        %v1172 = vpop.xlane.xlu0 %1171
        %v1173 = vadd.f32 %v1169, %v1172
        %v1174 = vmul.f32 %v1165, %v1057
        %v1175 = vpack.c.bf16 %v1168, %v1168
        %1176 = vrot.lane.b32.xlu0 %v676, 40
        %v1177 = vpop.permute.xlu0 %1176
        %v1179 = vsel %vm679, %v1175, 0
        %v1182 = vsel %vm722, %v1177, 0
        %1184 = vmatpush.bf16.msra.mxu0 0
        %1185 = vmatpush.bf16.msra.mxu0 0
        %1186 = vmatpush.bf16.msra.mxu0 0
        %1187 = vmatpush.bf16.msra.mxu0 0
        %1188 = vmatpush.bf16.msra.mxu0 0
        %1189 = vmatpush.bf16.msra.mxu0 0
        %1190 = vmatpush.bf16.msra.mxu0 0
        %1191 = vmatpush.bf16.msra.mxu0 %v1182
        %1192 = vmatmul.bf16.gmra.mxu0 %v1179
        %v1193 = vpop.f32.mrf.mxu0
        %v1194 = vadd.f32 0.0, %v1193
        %v1195 = vpop.f32.mrf.mxu0
        %1196 = vdwg.mxu0
        %v1197 = vadd.f32 %v1174, %v1194
        %v1198 = vrcp.pop %v1173
        %v1199 = vmul.f32 %v1197, %v1198
        %v1200 = vpack.c.bf16 %v1199, %v1199
        %v1202 = vunpack.c.l.b16 %v896
        %v1203 = vpack.c.b16 %v1202, %v1202
        %1204 = vrot.lane.b32.xlu0 %v1203, 8
        %v1205 = vpop.permute.xlu0 %1204
        %v1207 = vunpack.c.l.b16 %v1048
        %v1208 = vpack.c.b16 %v1207, %v1207
        %1209 = vrot.lane.b32.xlu0 %v1208, 16
        %v1210 = vpop.permute.xlu0 %1209
        %v1212 = vunpack.c.l.b16 %v1200
        %v1213 = vpack.c.b16 %v1212, %v1212
        %1214 = vrot.lane.b32.xlu0 %v1213, 24
        %v1215 = vpop.permute.xlu0 %1214
        %v1218 = vsel %vm679, %v742, %v1205
        %vm1219 = vcmask 130048
        %v1221 = vsel %vm1219, %v1218, %v1210
        %vm1222 = vcmask 195584
        %v1224 = vsel %vm1222, %v1221, %v1215
        %v1225 = vld [vmem:[%s5] sm:$0xf]
        %v1226 = vld [vmem:[%s5 + $0x4] sm:$0xf]
        %v1227 = vld [vmem:[%s5 + $0x8] sm:$0xf]
        %v1228 = vld [vmem:[%s5 + $0xc] sm:$0xf]
        %v1229 = vld [vmem:[%s6] sm:$0x1]
        %v1231 = vperm.slane %v1229, 0
        %v1237 = vunpack.c.l.b16 %v1225
        %v1238 = vunpack.c.l.b16 %v1226
        %v1239 = vunpack.c.l.b16 %v1227
        %v1240 = vunpack.c.l.b16 %v1228
        %v1241 = vpack.c.b16 %v1238, %v1237
        %v1242 = vpack.c.b16 %v1240, %v1239
        %v1245 = vsel %vm483, %v1224, 0
        %1247 = vmatpush.bf16.msra.mxu0 0
        %1248 = vmatpush.bf16.msra.mxu0 0
        %1249 = vmatpush.bf16.msra.mxu0 0
        %1250 = vmatpush.bf16.msra.mxu0 0
        %1251 = vmatpush.bf16.msra.mxu0 0
        %1252 = vmatpush.bf16.msra.mxu0 0
        %1253 = vmatpush.bf16.msra.mxu0 %v1242
        %1254 = vmatpush.bf16.msra.mxu0 %v1241
        %1255 = vmatmul.bf16.gmra.mxu0 %v1245
        %v1256 = vpop.f32.mrf.mxu0
        %v1257 = vadd.f32 %v1231, %v1256
        %v1258 = vpop.f32.mrf.mxu0
        %1259 = vdwg.mxu0
        %v1260 = vadd.f32 %v480, %v1257
        %v1261 = vld [vmem:[%s7] sm:$0x1]
        %v1262 = vld [vmem:[%s8] sm:$0x1]
        %v1263 = vsel %vm483, %v1260, 0.0
        %1264 = vadd.xlane.f32.xlu0 %v1263
        %v1265 = vpop.xlane.xlu0 %1264
        %v1266 = vmul.f32 %v1265, %v493
        %v1267 = vsub.f32 %v1260, %v1266
        %v1268 = vmul.f32 %v1267, %v1267
        %v1269 = vsel %vm483, %v1268, 0.0
        %1270 = vadd.xlane.f32.xlu0 %v1269
        %v1271 = vpop.xlane.xlu0 %1270
        %v1272 = vmul.f32 %v1271, %v493
        %v1273 = vadd.f32 %v1272, 1e-05
        %v1274 = vrsqrt.pop %v1273
        %v1275 = vmul.f32 %v1274, %v1273
        %v1276 = vmul.f32 %v1275, %v1274
        %v1277 = vmul.f32 0.5, %v1276
        %v1278 = vsub.f32 1.5, %v1277
        %v1279 = vmul.f32 %v1274, %v1278
        %v1280 = vmul.f32 %v1273, %v1279
        %vm1281 = vcmp.eq.f32.partialorder %v1273, inf
        %v1282 = vsel %vm1281, %v1273, %v1280
        %vm1283 = vcmp.eq.f32.partialorder %v1273, 0.0
        %v1284 = vand.u32 %v1273, 2147483648
        %v1285 = vsel %vm1283, %v1284, %v1282
        %v1286 = vrcp.pop %v1285
        %v1287 = vmul.f32 %v1285, %v1286
        %v1288 = vsub.f32 1.0, %v1287
        %v1289 = vmul.f32 %v1286, %v1288
        %v1290 = vadd.f32 %v1286, %v1289
        %vm1291 = vweird.f32 %v1285
        %vm1292 = vweird.f32 %v1286
        %vm1293 = vmor %vm1291, %vm1292
        %v1294 = vsel %vm1293, %v1286, %v1290
        %v1295 = vand.u32 2147483647, %v1285
        %vm1296 = vcmp.eq.f32.partialorder %v1295, 8.507059e+37
        %v1297 = vand.u32 %v1285, 2147483648
        %v1298 = vor.u32 1.1754944e-38, %v1297
        %v1299 = vsel %vm1296, %v1298, %v1294
        %v1300 = vmul.f32 %v1267, %v1299
        %v1302 = vperm.slane %v1261, 0
        %v1304 = vmul.f32 %v1300, %v1302
        %v1306 = vperm.slane %v1262, 0
        %v1308 = vadd.f32 %v1304, %v1306
        %v1309 = vpack.c.bf16 %v1308, %v1308
        %v1310 = vld [vmem:[%s9] sm:$0xf]
        %v1311 = vld [vmem:[%s9 + $0x4] sm:$0xf]
        %v1312 = vld [vmem:[%s9 + $0x8] sm:$0xf]
        %v1313 = vld [vmem:[%s9 + $0xc] sm:$0xf]
        %v1314 = vld [vmem:[%s10] sm:$0x1]
        %v1316 = vperm.slane %v1314, 0
        %v1322 = vunpack.c.l.b16 %v1310
        %v1323 = vunpack.c.l.b16 %v1311
        %v1324 = vunpack.c.l.b16 %v1312
        %v1325 = vunpack.c.l.b16 %v1313
        %v1326 = vpack.c.b16 %v1323, %v1322
        %v1327 = vpack.c.b16 %v1325, %v1324
        %v1331 = vsel %vm483, %v1309, 0
        %1333 = vmatpush.bf16.msra.mxu0 0
        %1334 = vmatpush.bf16.msra.mxu0 0
        %1335 = vmatpush.bf16.msra.mxu0 0
        %1336 = vmatpush.bf16.msra.mxu0 0
        %1337 = vmatpush.bf16.msra.mxu0 0
        %1338 = vmatpush.bf16.msra.mxu0 0
        %1339 = vmatpush.bf16.msra.mxu0 %v1327
        %1340 = vmatpush.bf16.msra.mxu0 %v1326
        %1341 = vmatmul.bf16.gmra.mxu0 %v1331
        %v1342 = vpop.f32.mrf.mxu0
        %v1343 = vadd.f32 %v1316, %v1342
        %v1344 = vpop.f32.mrf.mxu0
        %1345 = vdwg.mxu0
        %v1346 = vmul.f32 %v1343, 0.5
        %v1347 = vmul.f32 %v1343, 0.70710677
        %v1348 = vmul.f32 %v1347, %v1347
        %v1349 = vmin.f32 16.0, %v1348
        %v1350 = vmul.f32 %v1349, 2.1237322e-06
        %v1351 = vadd.f32 %v1350, 0.00028619796
        %v1352 = vmul.f32 %v1349, %v1351
        %v1353 = vadd.f32 %v1352, 0.0036580483
        %v1354 = vmul.f32 %v1349, %v1353
        %v1355 = vadd.f32 %v1354, 0.05243302
        %v1356 = vmul.f32 %v1349, %v1355
        %v1357 = vadd.f32 %v1356, 0.18741608
        %v1358 = vmul.f32 %v1349, %v1357
        %v1359 = vadd.f32 %v1358, 1.1283791
        %v1360 = vmul.f32 %v1347, %v1359
        %v1361 = vmul.f32 %v1349, 3.8918573e-05
        %v1362 = vadd.f32 %v1361, 0.001143296
        %v1363 = vmul.f32 %v1349, %v1362
        %v1364 = vadd.f32 %v1363, 0.014752088
        %v1365 = vmul.f32 %v1349, %v1364
        %v1366 = vadd.f32 %v1365, 0.112945676
        %v1367 = vmul.f32 %v1349, %v1366
        %v1368 = vadd.f32 %v1367, 0.4994258
        %v1369 = vmul.f32 %v1349, %v1368
        %v1370 = vadd.f32 %v1369, 1.0
        %v1371 = vrcp.pop %v1370
        %v1372 = vmul.f32 %v1370, %v1371
        %v1373 = vsub.f32 1.0, %v1372
        %v1374 = vmul.f32 %v1371, %v1373
        %v1375 = vadd.f32 %v1371, %v1374
        %vm1376 = vweird.f32 %v1370
        %vm1377 = vweird.f32 %v1371
        %vm1378 = vmor %vm1376, %vm1377
        %v1379 = vsel %vm1378, %v1371, %v1375
        %v1380 = vand.u32 2147483647, %v1370
        %vm1381 = vcmp.eq.f32.partialorder %v1380, 8.507059e+37
        %v1382 = vand.u32 %v1370, 2147483648
        %v1383 = vor.u32 1.1754944e-38, %v1382
        %v1384 = vsel %vm1381, %v1383, %v1379
        %v1385 = vmul.f32 %v1360, %v1384
        %v1386 = vmin.f32 %v1385, 1.0
        %v1387 = vmax.f32 %v1386, -1.0
        %v1388 = vadd.f32 %v1387, 1.0
        %v1389 = vmul.f32 %v1346, %v1388
        %v1390 = vpack.c.bf16 %v1389, %v1389
        %v1391 = vld [vmem:[%s11] sm:$0xf]
        %v1392 = vld [vmem:[%s11 + $0x4] sm:$0xf]
        %v1393 = vld [vmem:[%s11 + $0x8] sm:$0xf]
        %v1394 = vld [vmem:[%s11 + $0xc] sm:$0xf]
        %v1395 = vld [vmem:[%s11 + $0x10] sm:$0xf]
        %v1396 = vld [vmem:[%s11 + $0x14] sm:$0xf]
        %v1397 = vld [vmem:[%s11 + $0x18] sm:$0xf]
        %v1398 = vld [vmem:[%s11 + $0x1c] sm:$0xf]
        %v1399 = vld [vmem:[%s11 + $0x20] sm:$0xf]
        %v1400 = vld [vmem:[%s11 + $0x24] sm:$0xf]
        %v1401 = vld [vmem:[%s11 + $0x28] sm:$0xf]
        %v1402 = vld [vmem:[%s11 + $0x2c] sm:$0xf]
        %v1403 = vld [vmem:[%s11 + $0x30] sm:$0xf]
        %v1404 = vld [vmem:[%s11 + $0x34] sm:$0xf]
        %v1405 = vld [vmem:[%s11 + $0x38] sm:$0xf]
        %v1406 = vld [vmem:[%s11 + $0x3c] sm:$0xf]
        %v1407 = vld [vmem:[%s12] sm:$0x1]
        %v1409 = vperm.slane %v1407, 0
        %v1427 = vunpack.c.l.b16 %v1391
        %v1428 = vunpack.c.l.b16 %v1392
        %v1429 = vunpack.c.l.b16 %v1393
        %v1430 = vunpack.c.l.b16 %v1394
        %v1431 = vunpack.c.l.b16 %v1395
        %v1432 = vunpack.c.l.b16 %v1396
        %v1433 = vunpack.c.l.b16 %v1397
        %v1434 = vunpack.c.l.b16 %v1398
        %v1435 = vunpack.c.l.b16 %v1399
        %v1436 = vunpack.c.l.b16 %v1400
        %v1437 = vunpack.c.l.b16 %v1401
        %v1438 = vunpack.c.l.b16 %v1402
        %v1439 = vunpack.c.l.b16 %v1403
        %v1440 = vunpack.c.l.b16 %v1404
        %v1441 = vunpack.c.l.b16 %v1405
        %v1442 = vunpack.c.l.b16 %v1406
        %v1443 = vpack.c.b16 %v1428, %v1427
        %v1444 = vpack.c.b16 %v1430, %v1429
        %v1445 = vpack.c.b16 %v1432, %v1431
        %v1446 = vpack.c.b16 %v1434, %v1433
        %v1447 = vpack.c.b16 %v1436, %v1435
        %v1448 = vpack.c.b16 %v1438, %v1437
        %v1449 = vpack.c.b16 %v1440, %v1439
        %v1450 = vpack.c.b16 %v1442, %v1441
        %1459 = vmatpush.bf16.msra.mxu0 %v1450
        %1460 = vmatpush.bf16.msra.mxu0 %v1449
        %1461 = vmatpush.bf16.msra.mxu0 %v1448
        %1462 = vmatpush.bf16.msra.mxu0 %v1447
        %1463 = vmatpush.bf16.msra.mxu0 %v1446
        %1464 = vmatpush.bf16.msra.mxu0 %v1445
        %1465 = vmatpush.bf16.msra.mxu0 %v1444
        %1466 = vmatpush.bf16.msra.mxu0 %v1443
        %1467 = vmatmul.bf16.gmra.mxu0 %v1390
        %v1468 = vpop.f32.mrf.mxu0
        %v1469 = vadd.f32 %v1409, %v1468
        %v1470 = vpop.f32.mrf.mxu0
        %1471 = vdwg.mxu0
        %v1472 = vadd.f32 %v1260, %v1469
        %1473 = vst.msk [vmem:[%s470] sm:$0xff] %vm483, %v1472
        %s1474 = sand.u32 %s330, 1
        %s1475 = scalar_lea.sflag [#allocation6], %s1474
        %s1476 = sand.u32 %s330, 1
        %s1477 = smul.addr %s1476, 8
        %s1478 = scalar_lea.vmem [#allocation7], %s1477
        // Predicated region
        $region105: #{tpu_custom_call.1} parent=71 // pred_check
          %p1479 = pneg %p340
        $region106: #{tpu_custom_call.1} parent=71 // pred_check_branch
          %1481 = sbr.rel (%p1479) target = $region108
        $region107: #{tpu_custom_call.1} parent=71 // pred_region
          %1483 = vsyncadd %s1475, 0
          %s1484 = smul.addr %s32, 2
          %s1485 = sadd.s32 %s33, %s1484
          %s1486 = smul.addr %s1485, 8
          %s1487 = scalar_lea.hbm %s13, %s1486
          %s1489 = sshll.u32 %s1478, 4
          %s1490 = int_to_ptr.vmem [resolvable:$true] %s1489
          %s1491 = sshll.u32 %s1487, 4
          %s1492 = int_to_ptr.hbm [resolvable:$true] %s1491
          %1494 = dma.vmem_to_hbm [thread:$0]  %s1490, 128, %s1492, %s1475
        $region108: #{tpu_custom_call.1} parent=71 // pred_fallthru
          _
      $region72: #{tpu_custom_call.1} parent=5 // pred_fallthru
        _
      %p1495 = scmp.le.s32.totalorder 2, %s23
      // Predicated region
      $region109: #{tpu_custom_call.1} parent=5 // pred_check
        %p1496 = pneg %p1495
      $region110: #{tpu_custom_call.1} parent=5 // pred_check_branch
        %1498 = sbr.rel (%p1496) target = $region112
      $region111: #{tpu_custom_call.1} parent=5 // pred_region
        %s1499 = ssub.s32 %s23, 2
        // Predicated region
        $region113: #{tpu_custom_call.1} parent=111 // pred_check
          %p1500 = pneg %p346
        $region114: #{tpu_custom_call.1} parent=111 // pred_check_branch
          %1502 = sbr.rel (%p1500) target = $region116
        $region115: #{tpu_custom_call.1} parent=111 // pred_region
          %s1503 = sand.u32 %s331, 1
          %s1504 = scalar_lea.sflag [#allocation6], %s1503
          %s1505 = sand.u32 %s331, 1
          %s1506 = smul.addr %s1505, 8
          %s1507 = scalar_lea.vmem [#allocation7], %s1506
          %1509 = dma.done %s1504, 128
        $region116: #{tpu_custom_call.1} parent=111 // pred_fallthru
          _
      $region112: #{tpu_custom_call.1} parent=5 // pred_fallthru
        _
    $region6: #{tpu_custom_call.1} parent=1 // loop_footer
      %s27 = sadd.s32 1, %s23
    $region7: #{tpu_custom_call.1} parent=1 // loop_footer_branch
      %22 = sbr.rel target = $region3
    $region8: #{tpu_custom_call.1} parent=1 // loop_exit
      _
    %1510 = vsyncpa [#allocation5], 1
    %s1511 = scalar_lea.sflag [#allocation5], 1
    %1512 = vsyncpa %s1511, 1
    %1513 = vsyncpa [#allocation6], 1
    %s1514 = scalar_lea.sflag [#allocation6], 1
    %1515 = vsyncpa %s1514, 1

</llo_original>
